<compile_context>
chip_gen: v7x
topology: tpu7x:2x2x1
jax: 0.10.0
libtpu: 0.0.40
codegen_flags: <defaults>
</compile_context>

<pallas_src>
import functools
import math

import jax
import jax.numpy as jnp
from jax import lax
from jax.experimental import pallas as pl
from jax.experimental.pallas import tpu as pltpu


def _conv3x3_lanes(a, w_ref, b_ref, masks, width, relu):
    """3x3 'same' conv in spatial-on-lanes layout.

    a     : (Cin, P) f32 value, P = H*W pixels on the lane axis.
    w_ref : (Cout, 9*Cin) Ref, contraction dim ordered (ky, kx, ci).
    b_ref : (Cout, 1) Ref.
    masks : (9, P) f32 value; masks[ky*3+kx, p] == 0 where tap (ky, kx) falls
            outside the image (this implements the zero padding).
    Returns (Cout, P) f32.
    """
    _, npix = a.shape
    pieces = []
    for ky in range(3):
        for kx in range(3):
            t = ky * 3 + kx
            s = (ky - 1) * width + (kx - 1)        # want shifted[p] = a[p + s]
            if s == 0:
                pieces.append(a)                   # centre tap: identity, mask == 1
            else:
                rolled = pltpu.roll(a, shift=(-s) % npix, axis=1)   # XLU lane roll
                pieces.append(rolled * masks[t:t + 1, :])
    slab = jnp.concatenate(pieces, axis=0)         # (9*Cin, P), lane-dense
    acc = jnp.dot(w_ref[...], slab, preferred_element_type=jnp.float32)
    acc = acc + b_ref[...]
    if relu:
        acc = jnp.maximum(acc, 0.0)
    return acc


def unet_fused_kernel(x_ref, masks_ref, w1_ref, b1_ref, w2_ref, b2_ref,
                      w3_ref, b3_ref, w4_ref, b4_ref, o_ref, *, width):
    # x_ref : (1, Cin_padded, P)  one NCHW batch element, pixels flattened onto lanes
    # o_ref : (1, 2, P)           lane-dense output block (N, C, H*W)
    masks = masks_ref[...]                         # (9, P), loaded once per step
    x = x_ref[0]                                   # (Cin_padded, P)

    # --- encoder ---
    a1 = _conv3x3_lanes(x,  w1_ref, b1_ref, masks, width, relu=True)   # (16, P)
    a2 = _conv3x3_lanes(a1, w2_ref, b2_ref, masks, width, relu=True)   # (32, P)
    # --- decoder ---
    a3 = _conv3x3_lanes(a2, w3_ref, b3_ref, masks, width, relu=True)   # (16, P)
    y = jnp.dot(w4_ref[...], a3, preferred_element_type=jnp.float32) + b4_ref[...]
    o_ref[0] = y.astype(o_ref.dtype)               # full-width (2, P) store


def simple_2d_unet(x_nchw, params):
    """Forward pass of Simple2DUNet.  x_nchw: (B, 4, H, W) float32 (PyTorch layout)."""
    (w1, b1), (w2, b2), (w3, b3), (w4, b4) = params
    B, c_in, H, W = x_nchw.shape
    c_out = w4.shape[0]
    P = H * W

    # ---- wrapper-side layout plumbing (free reshapes / one-time weight repacks;
    #      no transposes and no compute hoisted out of the kernel) ----
    x_flat = x_nchw.reshape(B, c_in, P)            # NCHW -> (B, C, H*W)

    # Pad input channels up to a multiple of 8 so every per-tap slab piece is
    # sublane-aligned (zero channels contribute nothing to the matmul).
    cin_pad = (-c_in) % 8
    if cin_pad:
        x_flat = jnp.pad(x_flat, ((0, 0), (0, cin_pad), (0, 0)))
        w1 = jnp.pad(w1, ((0, 0), (0, cin_pad), (0, 0), (0, 0)))
    c_in_p = c_in + cin_pad

    def w_tap(w):   # (Cout, Cin, 3, 3) -> (Cout, 9*Cin), K ordered (ky, kx, ci)
        return jnp.transpose(w, (0, 2, 3, 1)).reshape(w.shape[0], -1)

    w1t, w2t, w3t = w_tap(w1), w_tap(w2), w_tap(w3)
    w4t = w4[:, :, 0, 0]                           # (c_out, 16) 1x1 conv
    b1c, b2c, b3c, b4c = (b.reshape(-1, 1) for b in (b1, b2, b3, b4))

    # Per-tap validity masks: zero padding expressed as lane masks (built once).
    pix = jnp.arange(P, dtype=jnp.int32)
    py, px = pix // W, pix % W
    masks = jnp.stack(
        [((py + ky - 1 >= 0) & (py + ky - 1 < H) &
          (px + kx - 1 >= 0) & (px + kx - 1 < W)).astype(jnp.float32)
         for ky in range(3) for kx in range(3)], axis=0)              # (9, P)

    # Small constants (weights/biases/masks, ~100 KiB total): whole-array VMEM
    # operands -> staged once, single buffer, no per-step double-buffer DMA.
    vmem = pl.BlockSpec(memory_space=pltpu.MemorySpace.VMEM)

    # NOTE: for large images (H*W >~ 128*128) add a row-block grid axis with a
    # +2-row halo and cast the slab/weights to bf16 so the per-layer
    # (9*Cin, P) slab fits v7x's 64 MiB VMEM; at 16x16 everything is tiny.
    out = pl.pallas_call(
        functools.partial(unet_fused_kernel, width=W),
        out_shape=jax.ShapeDtypeStruct((B, c_out, P), x_nchw.dtype),
        grid=(B,),
        in_specs=[pl.BlockSpec((1, c_in_p, P), lambda b: (b, 0, 0)),
                  vmem,                             # masks
                  vmem, vmem, vmem, vmem,           # w1, b1, w2, b2
                  vmem, vmem, vmem, vmem],          # w3, b3, w4, b4
        out_specs=pl.BlockSpec((1, c_out, P), lambda b: (b, 0, 0)),
        compiler_params=pltpu.CompilerParams(
            dimension_semantics=("parallel",)),     # batch splits across TCs (v7x)
    )(x_flat, masks, w1t, b1c, w2t, b2c, w3t, b3c, w4t, b4c)

    return out.reshape(B, c_out, H, W)             # already NCHW, no transpose


# ----------------------- init + pure-JAX reference -----------------------

def init_params(key):
    def conv_init(k, c_out, c_in, ksz):
        fan_in = c_in * ksz * ksz
        bound = 1.0 / math.sqrt(fan_in)
        kw, kb = jax.random.split(k)
        w = jax.random.uniform(kw, (c_out, c_in, ksz, ksz), jnp.float32, -bound, bound)
        b = jax.random.uniform(kb, (c_out,), jnp.float32, -bound, bound)
        return w, b

    k1, k2, k3, k4 = jax.random.split(key, 4)
    return (conv_init(k1, 16, 4, 3),
            conv_init(k2, 32, 16, 3),
            conv_init(k3, 16, 32, 3),
            conv_init(k4, 2, 16, 1))


def unet_reference(x, params):
    (w1, b1), (w2, b2), (w3, b3), (w4, b4) = params

    def conv(x, w, b, pad):
        y = lax.conv_general_dilated(
            x, w, window_strides=(1, 1), padding=[(pad, pad), (pad, pad)],
            dimension_numbers=("NCHW", "OIHW", "NCHW"),
            precision=lax.Precision.HIGHEST)
        return y + b.reshape(1, -1, 1, 1)

    x = jnp.maximum(conv(x, w1, b1, 1), 0.0)
    x = jnp.maximum(conv(x, w2, b2, 1), 0.0)
    x = jnp.maximum(conv(x, w3, b3, 1), 0.0)
    return conv(x, w4, b4, 0)


if __name__ == "__main__":
    key = jax.random.PRNGKey(0)
    k_params, k_x = jax.random.split(key)

    B, C, H, W = 2, 4, 16, 16
    params = init_params(k_params)
    x = jax.random.normal(k_x, (B, C, H, W), dtype=jnp.float32)

    y = simple_2d_unet(x, params)
    y = jax.block_until_ready(y)

    y_ref = unet_reference(x, params)
    assert y.shape == (B, 2, H, W)
    err = jnp.max(jnp.abs(y - y_ref))
    assert jnp.allclose(y, y_ref, atol=1e-3, rtol=1e-3), f"max abs err {err}"

    print("KERNEL_OK")
</pallas_src>

<mosaic_0001>
module attributes {stable_mosaic.version = 11 : i64} {
  func.func @unet_fused_kernel(%arg0: i32, %arg1: memref<1x8x256xf32, #tpu.memory_space<vmem>>, %arg2: memref<9x256xf32, #tpu.memory_space<vmem>>, %arg3: memref<16x72xf32, #tpu.memory_space<vmem>>, %arg4: memref<16x1xf32, #tpu.memory_space<vmem>>, %arg5: memref<32x144xf32, #tpu.memory_space<vmem>>, %arg6: memref<32x1xf32, #tpu.memory_space<vmem>>, %arg7: memref<16x288xf32, #tpu.memory_space<vmem>>, %arg8: memref<16x1xf32, #tpu.memory_space<vmem>>, %arg9: memref<2x16xf32, #tpu.memory_space<vmem>>, %arg10: memref<2x1xf32, #tpu.memory_space<vmem>>, %arg11: memref<1x2x256xf32, #tpu.memory_space<vmem>>) attributes {dimension_semantics = [#tpu.dimension_semantics<parallel>], iteration_bounds = array<i64: 2>, scalar_prefetch = 0 : i64, scratch_operands = 0 : i64, tpu.core_type = #tpu.core_type<tc>, window_params = [{transform_indices = @transform_0, window_bounds = array<i64: 1, 8, 256>}, {pipeline_mode = #tpu.pipeline_mode<synchronous>, transform_indices = @transform_1, window_bounds = array<i64: 9, 256>}, {pipeline_mode = #tpu.pipeline_mode<synchronous>, transform_indices = @transform_2, window_bounds = array<i64: 16, 72>}, {pipeline_mode = #tpu.pipeline_mode<synchronous>, transform_indices = @transform_3, window_bounds = array<i64: 16, 1>}, {pipeline_mode = #tpu.pipeline_mode<synchronous>, transform_indices = @transform_4, window_bounds = array<i64: 32, 144>}, {pipeline_mode = #tpu.pipeline_mode<synchronous>, transform_indices = @transform_5, window_bounds = array<i64: 32, 1>}, {pipeline_mode = #tpu.pipeline_mode<synchronous>, transform_indices = @transform_6, window_bounds = array<i64: 16, 288>}, {pipeline_mode = #tpu.pipeline_mode<synchronous>, transform_indices = @transform_7, window_bounds = array<i64: 16, 1>}, {pipeline_mode = #tpu.pipeline_mode<synchronous>, transform_indices = @transform_8, window_bounds = array<i64: 2, 16>}, {pipeline_mode = #tpu.pipeline_mode<synchronous>, transform_indices = @transform_9, window_bounds = array<i64: 2, 1>}, {transform_indices = @transform_10, window_bounds = array<i64: 1, 2, 256>}]} {
    %c0 = arith.constant 0 : index
    %c0_0 = arith.constant 0 : index
    %0 = vector.load %arg2[%c0, %c0_0] : memref<9x256xf32, #tpu.memory_space<vmem>>, vector<9x256xf32>
    %c0_1 = arith.constant 0 : index
    %c0_2 = arith.constant 0 : index
    %c0_3 = arith.constant 0 : index
    %1 = vector.load %arg1[%c0_1, %c0_2, %c0_3] : memref<1x8x256xf32, #tpu.memory_space<vmem>>, vector<1x8x256xf32>
    %2 = vector.shape_cast %1 : vector<1x8x256xf32> to vector<8x256xf32>
    %c17_i32 = arith.constant 17 : i32
    %3 = tpu.dynamic_rotate %2 by %c17_i32 dim 1 : vector<8x256xf32>, i32 -> vector<8x256xf32>
    %4 = vector.extract_strided_slice %0 {offsets = [0, 0], sizes = [1, 256], strides = [1, 1]} : vector<9x256xf32> to vector<1x256xf32>
    %5 = vector.broadcast %4 : vector<1x256xf32> to vector<8x256xf32>
    %6 = arith.mulf %3, %5 : vector<8x256xf32>
    %c16_i32 = arith.constant 16 : i32
    %7 = tpu.dynamic_rotate %2 by %c16_i32 dim 1 : vector<8x256xf32>, i32 -> vector<8x256xf32>
    %8 = vector.extract_strided_slice %0 {offsets = [1, 0], sizes = [1, 256], strides = [1, 1]} : vector<9x256xf32> to vector<1x256xf32>
    %9 = vector.broadcast %8 : vector<1x256xf32> to vector<8x256xf32>
    %10 = arith.mulf %7, %9 : vector<8x256xf32>
    %c15_i32 = arith.constant 15 : i32
    %11 = tpu.dynamic_rotate %2 by %c15_i32 dim 1 : vector<8x256xf32>, i32 -> vector<8x256xf32>
    %12 = vector.extract_strided_slice %0 {offsets = [2, 0], sizes = [1, 256], strides = [1, 1]} : vector<9x256xf32> to vector<1x256xf32>
    %13 = vector.broadcast %12 : vector<1x256xf32> to vector<8x256xf32>
    %14 = arith.mulf %11, %13 : vector<8x256xf32>
    %c1_i32 = arith.constant 1 : i32
    %15 = tpu.dynamic_rotate %2 by %c1_i32 dim 1 : vector<8x256xf32>, i32 -> vector<8x256xf32>
    %16 = vector.extract_strided_slice %0 {offsets = [3, 0], sizes = [1, 256], strides = [1, 1]} : vector<9x256xf32> to vector<1x256xf32>
    %17 = vector.broadcast %16 : vector<1x256xf32> to vector<8x256xf32>
    %18 = arith.mulf %15, %17 : vector<8x256xf32>
    %c255_i32 = arith.constant 255 : i32
    %19 = tpu.dynamic_rotate %2 by %c255_i32 dim 1 : vector<8x256xf32>, i32 -> vector<8x256xf32>
    %20 = vector.extract_strided_slice %0 {offsets = [5, 0], sizes = [1, 256], strides = [1, 1]} : vector<9x256xf32> to vector<1x256xf32>
    %21 = vector.broadcast %20 : vector<1x256xf32> to vector<8x256xf32>
    %22 = arith.mulf %19, %21 : vector<8x256xf32>
    %c241_i32 = arith.constant 241 : i32
    %23 = tpu.dynamic_rotate %2 by %c241_i32 dim 1 : vector<8x256xf32>, i32 -> vector<8x256xf32>
    %24 = vector.extract_strided_slice %0 {offsets = [6, 0], sizes = [1, 256], strides = [1, 1]} : vector<9x256xf32> to vector<1x256xf32>
    %25 = vector.broadcast %24 : vector<1x256xf32> to vector<8x256xf32>
    %26 = arith.mulf %23, %25 : vector<8x256xf32>
    %c240_i32 = arith.constant 240 : i32
    %27 = tpu.dynamic_rotate %2 by %c240_i32 dim 1 : vector<8x256xf32>, i32 -> vector<8x256xf32>
    %28 = vector.extract_strided_slice %0 {offsets = [7, 0], sizes = [1, 256], strides = [1, 1]} : vector<9x256xf32> to vector<1x256xf32>
    %29 = vector.broadcast %28 : vector<1x256xf32> to vector<8x256xf32>
    %30 = arith.mulf %27, %29 : vector<8x256xf32>
    %c239_i32 = arith.constant 239 : i32
    %31 = tpu.dynamic_rotate %2 by %c239_i32 dim 1 : vector<8x256xf32>, i32 -> vector<8x256xf32>
    %32 = vector.extract_strided_slice %0 {offsets = [8, 0], sizes = [1, 256], strides = [1, 1]} : vector<9x256xf32> to vector<1x256xf32>
    %33 = vector.broadcast %32 : vector<1x256xf32> to vector<8x256xf32>
    %34 = arith.mulf %31, %33 : vector<8x256xf32>
    %35 = tpu.concatenate %6, %10, %14, %18, %2, %22, %26, %30, %34 in 0 : vector<8x256xf32>, vector<8x256xf32>, vector<8x256xf32>, vector<8x256xf32>, vector<8x256xf32>, vector<8x256xf32>, vector<8x256xf32>, vector<8x256xf32>, vector<8x256xf32> -> vector<72x256xf32>
    %c0_4 = arith.constant 0 : index
    %c0_5 = arith.constant 0 : index
    %36 = vector.load %arg3[%c0_4, %c0_5] : memref<16x72xf32, #tpu.memory_space<vmem>>, vector<16x72xf32>
    %cst = arith.constant dense<0.000000e+00> : vector<16x256xf32>
    %37 = tpu.matmul %36, %35, %cst {dimension_numbers = #tpu.dot_dimension_numbers<[1], [0], [0], [1], [0, 0, 1, 1], [], []>} : vector<16x72xf32>, vector<72x256xf32>, vector<16x256xf32> -> vector<16x256xf32>
    %c0_6 = arith.constant 0 : index
    %c0_7 = arith.constant 0 : index
    %38 = vector.load %arg4[%c0_6, %c0_7] : memref<16x1xf32, #tpu.memory_space<vmem>>, vector<16x1xf32>
    %39 = vector.broadcast %38 : vector<16x1xf32> to vector<16x256xf32>
    %40 = arith.addf %37, %39 : vector<16x256xf32>
    %cst_8 = arith.constant 0.000000e+00 : f32
    %41 = vector.broadcast %cst_8 : f32 to vector<16x256xf32>
    %42 = arith.maximumf %40, %41 : vector<16x256xf32>
    %c17_i32_9 = arith.constant 17 : i32
    %43 = tpu.dynamic_rotate %42 by %c17_i32_9 dim 1 : vector<16x256xf32>, i32 -> vector<16x256xf32>
    %44 = vector.extract_strided_slice %0 {offsets = [0, 0], sizes = [1, 256], strides = [1, 1]} : vector<9x256xf32> to vector<1x256xf32>
    %45 = vector.broadcast %44 : vector<1x256xf32> to vector<16x256xf32>
    %46 = arith.mulf %43, %45 : vector<16x256xf32>
    %c16_i32_10 = arith.constant 16 : i32
    %47 = tpu.dynamic_rotate %42 by %c16_i32_10 dim 1 : vector<16x256xf32>, i32 -> vector<16x256xf32>
    %48 = vector.extract_strided_slice %0 {offsets = [1, 0], sizes = [1, 256], strides = [1, 1]} : vector<9x256xf32> to vector<1x256xf32>
    %49 = vector.broadcast %48 : vector<1x256xf32> to vector<16x256xf32>
    %50 = arith.mulf %47, %49 : vector<16x256xf32>
    %c15_i32_11 = arith.constant 15 : i32
    %51 = tpu.dynamic_rotate %42 by %c15_i32_11 dim 1 : vector<16x256xf32>, i32 -> vector<16x256xf32>
    %52 = vector.extract_strided_slice %0 {offsets = [2, 0], sizes = [1, 256], strides = [1, 1]} : vector<9x256xf32> to vector<1x256xf32>
    %53 = vector.broadcast %52 : vector<1x256xf32> to vector<16x256xf32>
    %54 = arith.mulf %51, %53 : vector<16x256xf32>
    %c1_i32_12 = arith.constant 1 : i32
    %55 = tpu.dynamic_rotate %42 by %c1_i32_12 dim 1 : vector<16x256xf32>, i32 -> vector<16x256xf32>
    %56 = vector.extract_strided_slice %0 {offsets = [3, 0], sizes = [1, 256], strides = [1, 1]} : vector<9x256xf32> to vector<1x256xf32>
    %57 = vector.broadcast %56 : vector<1x256xf32> to vector<16x256xf32>
    %58 = arith.mulf %55, %57 : vector<16x256xf32>
    %c255_i32_13 = arith.constant 255 : i32
    %59 = tpu.dynamic_rotate %42 by %c255_i32_13 dim 1 : vector<16x256xf32>, i32 -> vector<16x256xf32>
    %60 = vector.extract_strided_slice %0 {offsets = [5, 0], sizes = [1, 256], strides = [1, 1]} : vector<9x256xf32> to vector<1x256xf32>
    %61 = vector.broadcast %60 : vector<1x256xf32> to vector<16x256xf32>
    %62 = arith.mulf %59, %61 : vector<16x256xf32>
    %c241_i32_14 = arith.constant 241 : i32
    %63 = tpu.dynamic_rotate %42 by %c241_i32_14 dim 1 : vector<16x256xf32>, i32 -> vector<16x256xf32>
    %64 = vector.extract_strided_slice %0 {offsets = [6, 0], sizes = [1, 256], strides = [1, 1]} : vector<9x256xf32> to vector<1x256xf32>
    %65 = vector.broadcast %64 : vector<1x256xf32> to vector<16x256xf32>
    %66 = arith.mulf %63, %65 : vector<16x256xf32>
    %c240_i32_15 = arith.constant 240 : i32
    %67 = tpu.dynamic_rotate %42 by %c240_i32_15 dim 1 : vector<16x256xf32>, i32 -> vector<16x256xf32>
    %68 = vector.extract_strided_slice %0 {offsets = [7, 0], sizes = [1, 256], strides = [1, 1]} : vector<9x256xf32> to vector<1x256xf32>
    %69 = vector.broadcast %68 : vector<1x256xf32> to vector<16x256xf32>
    %70 = arith.mulf %67, %69 : vector<16x256xf32>
    %c239_i32_16 = arith.constant 239 : i32
    %71 = tpu.dynamic_rotate %42 by %c239_i32_16 dim 1 : vector<16x256xf32>, i32 -> vector<16x256xf32>
    %72 = vector.extract_strided_slice %0 {offsets = [8, 0], sizes = [1, 256], strides = [1, 1]} : vector<9x256xf32> to vector<1x256xf32>
    %73 = vector.broadcast %72 : vector<1x256xf32> to vector<16x256xf32>
    %74 = arith.mulf %71, %73 : vector<16x256xf32>
    %75 = tpu.concatenate %46, %50, %54, %58, %42, %62, %66, %70, %74 in 0 : vector<16x256xf32>, vector<16x256xf32>, vector<16x256xf32>, vector<16x256xf32>, vector<16x256xf32>, vector<16x256xf32>, vector<16x256xf32>, vector<16x256xf32>, vector<16x256xf32> -> vector<144x256xf32>
    %c0_17 = arith.constant 0 : index
    %c0_18 = arith.constant 0 : index
    %76 = vector.load %arg5[%c0_17, %c0_18] : memref<32x144xf32, #tpu.memory_space<vmem>>, vector<32x144xf32>
    %cst_19 = arith.constant dense<0.000000e+00> : vector<32x256xf32>
    %77 = tpu.matmul %76, %75, %cst_19 {dimension_numbers = #tpu.dot_dimension_numbers<[1], [0], [0], [1], [0, 0, 1, 1], [], []>} : vector<32x144xf32>, vector<144x256xf32>, vector<32x256xf32> -> vector<32x256xf32>
    %c0_20 = arith.constant 0 : index
    %c0_21 = arith.constant 0 : index
    %78 = vector.load %arg6[%c0_20, %c0_21] : memref<32x1xf32, #tpu.memory_space<vmem>>, vector<32x1xf32>
    %79 = vector.broadcast %78 : vector<32x1xf32> to vector<32x256xf32>
    %80 = arith.addf %77, %79 : vector<32x256xf32>
    %cst_22 = arith.constant 0.000000e+00 : f32
    %81 = vector.broadcast %cst_22 : f32 to vector<32x256xf32>
    %82 = arith.maximumf %80, %81 : vector<32x256xf32>
    %c17_i32_23 = arith.constant 17 : i32
    %83 = tpu.dynamic_rotate %82 by %c17_i32_23 dim 1 : vector<32x256xf32>, i32 -> vector<32x256xf32>
    %84 = vector.extract_strided_slice %0 {offsets = [0, 0], sizes = [1, 256], strides = [1, 1]} : vector<9x256xf32> to vector<1x256xf32>
    %85 = vector.broadcast %84 : vector<1x256xf32> to vector<32x256xf32>
    %86 = arith.mulf %83, %85 : vector<32x256xf32>
    %c16_i32_24 = arith.constant 16 : i32
    %87 = tpu.dynamic_rotate %82 by %c16_i32_24 dim 1 : vector<32x256xf32>, i32 -> vector<32x256xf32>
    %88 = vector.extract_strided_slice %0 {offsets = [1, 0], sizes = [1, 256], strides = [1, 1]} : vector<9x256xf32> to vector<1x256xf32>
    %89 = vector.broadcast %88 : vector<1x256xf32> to vector<32x256xf32>
    %90 = arith.mulf %87, %89 : vector<32x256xf32>
    %c15_i32_25 = arith.constant 15 : i32
    %91 = tpu.dynamic_rotate %82 by %c15_i32_25 dim 1 : vector<32x256xf32>, i32 -> vector<32x256xf32>
    %92 = vector.extract_strided_slice %0 {offsets = [2, 0], sizes = [1, 256], strides = [1, 1]} : vector<9x256xf32> to vector<1x256xf32>
    %93 = vector.broadcast %92 : vector<1x256xf32> to vector<32x256xf32>
    %94 = arith.mulf %91, %93 : vector<32x256xf32>
    %c1_i32_26 = arith.constant 1 : i32
    %95 = tpu.dynamic_rotate %82 by %c1_i32_26 dim 1 : vector<32x256xf32>, i32 -> vector<32x256xf32>
    %96 = vector.extract_strided_slice %0 {offsets = [3, 0], sizes = [1, 256], strides = [1, 1]} : vector<9x256xf32> to vector<1x256xf32>
    %97 = vector.broadcast %96 : vector<1x256xf32> to vector<32x256xf32>
    %98 = arith.mulf %95, %97 : vector<32x256xf32>
    %c255_i32_27 = arith.constant 255 : i32
    %99 = tpu.dynamic_rotate %82 by %c255_i32_27 dim 1 : vector<32x256xf32>, i32 -> vector<32x256xf32>
    %100 = vector.extract_strided_slice %0 {offsets = [5, 0], sizes = [1, 256], strides = [1, 1]} : vector<9x256xf32> to vector<1x256xf32>
    %101 = vector.broadcast %100 : vector<1x256xf32> to vector<32x256xf32>
    %102 = arith.mulf %99, %101 : vector<32x256xf32>
    %c241_i32_28 = arith.constant 241 : i32
    %103 = tpu.dynamic_rotate %82 by %c241_i32_28 dim 1 : vector<32x256xf32>, i32 -> vector<32x256xf32>
    %104 = vector.extract_strided_slice %0 {offsets = [6, 0], sizes = [1, 256], strides = [1, 1]} : vector<9x256xf32> to vector<1x256xf32>
    %105 = vector.broadcast %104 : vector<1x256xf32> to vector<32x256xf32>
    %106 = arith.mulf %103, %105 : vector<32x256xf32>
    %c240_i32_29 = arith.constant 240 : i32
    %107 = tpu.dynamic_rotate %82 by %c240_i32_29 dim 1 : vector<32x256xf32>, i32 -> vector<32x256xf32>
    %108 = vector.extract_strided_slice %0 {offsets = [7, 0], sizes = [1, 256], strides = [1, 1]} : vector<9x256xf32> to vector<1x256xf32>
    %109 = vector.broadcast %108 : vector<1x256xf32> to vector<32x256xf32>
    %110 = arith.mulf %107, %109 : vector<32x256xf32>
    %c239_i32_30 = arith.constant 239 : i32
    %111 = tpu.dynamic_rotate %82 by %c239_i32_30 dim 1 : vector<32x256xf32>, i32 -> vector<32x256xf32>
    %112 = vector.extract_strided_slice %0 {offsets = [8, 0], sizes = [1, 256], strides = [1, 1]} : vector<9x256xf32> to vector<1x256xf32>
    %113 = vector.broadcast %112 : vector<1x256xf32> to vector<32x256xf32>
    %114 = arith.mulf %111, %113 : vector<32x256xf32>
    %115 = tpu.concatenate %86, %90, %94, %98, %82, %102, %106, %110, %114 in 0 : vector<32x256xf32>, vector<32x256xf32>, vector<32x256xf32>, vector<32x256xf32>, vector<32x256xf32>, vector<32x256xf32>, vector<32x256xf32>, vector<32x256xf32>, vector<32x256xf32> -> vector<288x256xf32>
    %c0_31 = arith.constant 0 : index
    %c0_32 = arith.constant 0 : index
    %116 = vector.load %arg7[%c0_31, %c0_32] : memref<16x288xf32, #tpu.memory_space<vmem>>, vector<16x288xf32>
    %cst_33 = arith.constant dense<0.000000e+00> : vector<16x256xf32>
    %117 = tpu.matmul %116, %115, %cst_33 {dimension_numbers = #tpu.dot_dimension_numbers<[1], [0], [0], [1], [0, 0, 1, 1], [], []>} : vector<16x288xf32>, vector<288x256xf32>, vector<16x256xf32> -> vector<16x256xf32>
    %c0_34 = arith.constant 0 : index
    %c0_35 = arith.constant 0 : index
    %118 = vector.load %arg8[%c0_34, %c0_35] : memref<16x1xf32, #tpu.memory_space<vmem>>, vector<16x1xf32>
    %119 = vector.broadcast %118 : vector<16x1xf32> to vector<16x256xf32>
    %120 = arith.addf %117, %119 : vector<16x256xf32>
    %cst_36 = arith.constant 0.000000e+00 : f32
    %121 = vector.broadcast %cst_36 : f32 to vector<16x256xf32>
    %122 = arith.maximumf %120, %121 : vector<16x256xf32>
    %c0_37 = arith.constant 0 : index
    %c0_38 = arith.constant 0 : index
    %123 = vector.load %arg9[%c0_37, %c0_38] : memref<2x16xf32, #tpu.memory_space<vmem>>, vector<2x16xf32>
    %cst_39 = arith.constant dense<0.000000e+00> : vector<2x256xf32>
    %124 = tpu.matmul %123, %122, %cst_39 {dimension_numbers = #tpu.dot_dimension_numbers<[1], [0], [0], [1], [0, 0, 1, 1], [], []>} : vector<2x16xf32>, vector<16x256xf32>, vector<2x256xf32> -> vector<2x256xf32>
    %c0_40 = arith.constant 0 : index
    %c0_41 = arith.constant 0 : index
    %125 = vector.load %arg10[%c0_40, %c0_41] : memref<2x1xf32, #tpu.memory_space<vmem>>, vector<2x1xf32>
    %126 = vector.broadcast %125 : vector<2x1xf32> to vector<2x256xf32>
    %127 = arith.addf %124, %126 : vector<2x256xf32>
    %c0_42 = arith.constant 0 : index
    %c0_43 = arith.constant 0 : index
    %c0_44 = arith.constant 0 : index
    %128 = vector.load %arg11[%c0_42, %c0_43, %c0_44] : memref<1x2x256xf32, #tpu.memory_space<vmem>>, vector<1x2x256xf32>
    %129 = vector.shape_cast %128 : vector<1x2x256xf32> to vector<2x256xf32>
    %130 = vector.shape_cast %127 : vector<2x256xf32> to vector<1x2x256xf32>
    tpu.vector_store %arg11[%c0_42, %c0_43, %c0_44], %130 {strides = array<i32>} : memref<1x2x256xf32, #tpu.memory_space<vmem>>, vector<1x2x256xf32>,
    return
  }
  func.func @transform_0(%arg0: i32) -> (i32, i32, i32) {
    %c0_i32 = arith.constant 0 : i32
    %c0_i32_0 = arith.constant 0 : i32
    %c0_i32_1 = arith.constant 0 : i32
    return %arg0, %c0_i32, %c0_i32_0 : i32, i32, i32
  }
  func.func @transform_1(%arg0: i32) -> (i32, i32) {
    %c0_i32 = arith.constant 0 : i32
    %c0_i32_0 = arith.constant 0 : i32
    %c0_i32_1 = arith.constant 0 : i32
    return %c0_i32, %c0_i32_0 : i32, i32
  }
  func.func @transform_2(%arg0: i32) -> (i32, i32) {
    %c0_i32 = arith.constant 0 : i32
    %c0_i32_0 = arith.constant 0 : i32
    %c0_i32_1 = arith.constant 0 : i32
    return %c0_i32, %c0_i32_0 : i32, i32
  }
  func.func @transform_3(%arg0: i32) -> (i32, i32) {
    %c0_i32 = arith.constant 0 : i32
    %c0_i32_0 = arith.constant 0 : i32
    %c0_i32_1 = arith.constant 0 : i32
    return %c0_i32, %c0_i32_0 : i32, i32
  }
  func.func @transform_4(%arg0: i32) -> (i32, i32) {
    %c0_i32 = arith.constant 0 : i32
    %c0_i32_0 = arith.constant 0 : i32
    %c0_i32_1 = arith.constant 0 : i32
    return %c0_i32, %c0_i32_0 : i32, i32
  }
  func.func @transform_5(%arg0: i32) -> (i32, i32) {
    %c0_i32 = arith.constant 0 : i32
    %c0_i32_0 = arith.constant 0 : i32
    %c0_i32_1 = arith.constant 0 : i32
    return %c0_i32, %c0_i32_0 : i32, i32
  }
  func.func @transform_6(%arg0: i32) -> (i32, i32) {
    %c0_i32 = arith.constant 0 : i32
    %c0_i32_0 = arith.constant 0 : i32
    %c0_i32_1 = arith.constant 0 : i32
    return %c0_i32, %c0_i32_0 : i32, i32
  }
  func.func @transform_7(%arg0: i32) -> (i32, i32) {
    %c0_i32 = arith.constant 0 : i32
    %c0_i32_0 = arith.constant 0 : i32
    %c0_i32_1 = arith.constant 0 : i32
    return %c0_i32, %c0_i32_0 : i32, i32
  }
  func.func @transform_8(%arg0: i32) -> (i32, i32) {
    %c0_i32 = arith.constant 0 : i32
    %c0_i32_0 = arith.constant 0 : i32
    %c0_i32_1 = arith.constant 0 : i32
    return %c0_i32, %c0_i32_0 : i32, i32
  }
  func.func @transform_9(%arg0: i32) -> (i32, i32) {
    %c0_i32 = arith.constant 0 : i32
    %c0_i32_0 = arith.constant 0 : i32
    %c0_i32_1 = arith.constant 0 : i32
    return %c0_i32, %c0_i32_0 : i32, i32
  }
  func.func @transform_10(%arg0: i32) -> (i32, i32, i32) {
    %c0_i32 = arith.constant 0 : i32
    %c0_i32_0 = arith.constant 0 : i32
    %c0_i32_1 = arith.constant 0 : i32
    return %arg0, %c0_i32, %c0_i32_0 : i32, i32, i32
  }
}

</mosaic_0001>

<llo_original>
// kernel: tpu_custom_call.1
$region0: #{tpu_custom_call.1}
  #allocation0 [shape = 'u32[]', space=smem, size = 0x4, offset = 0x4, fixed_abs, tag = 'smem constant byte address 0x4 - core index']
  #allocation1 [shape = 'u32[144,128]{1,0:T(1,128)}', space=vmem, size = 0x12000, scoped, tag = 'internal scratch']
  %s0 = inlined_call_operand.hbm [shape: f32[2,8,256], index: 0, kind: input, shape index: {}]
  %s1 = inlined_call_operand.hbm [shape: f32[9,256], index: 1, kind: input, shape index: {}]
  %s2 = inlined_call_operand.vmem [shape: f32[16,72], index: 2, kind: input, shape index: {}]
  %s3 = inlined_call_operand.vmem [shape: f32[16,1], index: 3, kind: input, shape index: {}]
  %s4 = inlined_call_operand.vmem [shape: f32[32,144], index: 4, kind: input, shape index: {}]
  %s5 = inlined_call_operand.vmem [shape: f32[32,1], index: 5, kind: input, shape index: {}]
  %s6 = inlined_call_operand.hbm [shape: f32[16,288], index: 6, kind: input, shape index: {}]
  %s7 = inlined_call_operand.vmem [shape: f32[16,1], index: 7, kind: input, shape index: {}]
  %s8 = inlined_call_operand.vmem [shape: f32[2,16], index: 8, kind: input, shape index: {}]
  %s9 = inlined_call_operand.vmem [shape: f32[2,1], index: 9, kind: input, shape index: {}]
  %s10 = inlined_call_operand.hbm [shape: f32[2,2,256], index: 10, kind: output, shape index: {}]
  %s11 = sld [smem:[#allocation0]]
  $region85: #{tpu_custom_call.1} parent=0
    _
  %s13 = ssub.s32 1, %s11
  %s14 = scalar_select 0, %s13, %s11
  $region1: #{tpu_custom_call.1} parent=0
    #allocation2 [shape = 'u8[16384]{0}', space=vmem, size = 0x4000, scoped, tag = 'input window, operand 0']
    #allocation3 [shape = 's32[2]{0}', space=sflag, size = 0x8, scoped, tag = 'scoped memory for tpu_custom_call.1']
    #allocation4 [shape = 's32[2]{0}', space=sflag, size = 0x8, scoped, tag = 'scoped memory for tpu_custom_call.1']
    #allocation5 [shape = 'u8[16384]{0}', space=vmem, size = 0x4000, scoped, tag = 'input window, operand 1, single buffered']
    #allocation6 [shape = 's32[1]{0}', space=sflag, size = 0x4, scoped, tag = 'scoped memory for tpu_custom_call.1']
    #allocation7 [shape = 'u8[24576]{0}', space=vmem, size = 0x6000, scoped, tag = 'input window, operand 6, single buffered']
    #allocation8 [shape = 'u8[4096]{0}', space=vmem, size = 0x1000, scoped, tag = 'output window, operand 0']
    %15 = vsyncpa [#allocation3], 0
    %s16 = scalar_lea.sflag [#allocation3], 1
    %17 = vsyncpa %s16, 0
    %18 = vsyncpa [#allocation6], 0
    %19 = vsyncpa [#allocation4], 0
    %s20 = scalar_lea.sflag [#allocation4], 1
    %21 = vsyncpa %s20, 0
    loop: start=0, step=1, limit=4
    $region2: #{tpu_custom_call.1} parent=1 // loop_pre_header
      _
    $region3: #{tpu_custom_call.1} parent=1 // loop_header
      %s23 = sphi 0, %s27
      %p24 = scmp.ge.s32.totalorder %s23, 4
      %s33 = sphi 0, %s35
      %s36 = sphi 0, %s33
      %s37 = sphi 0, %s36
      %s53 = sphi 0, %s37
      %s57 = sphi 0, %s57
      %s59 = sphi 0, %s57
      %s60 = sphi 0, %s59
      %s74 = sphi 0, %s60
      %s78 = sphi 0, %s78
      %s80 = sphi 0, %s78
      %s81 = sphi 0, %s80
      %s95 = sphi 0, %s81
      %s99 = sphi 0, %s99
      %s101 = sphi 0, %s99
      %s102 = sphi 0, %s101
      %s116 = sphi 0, %s102
      %s120 = sphi 0, %s120
      %s122 = sphi 0, %s120
      %s123 = sphi 0, %s122
      %s137 = sphi 0, %s123
      %s141 = sphi 0, %s141
      %s143 = sphi 0, %s141
      %s144 = sphi 0, %s143
      %s158 = sphi 0, %s144
      %s162 = sphi 0, %s162
      %s164 = sphi 0, %s162
      %s165 = sphi 0, %s164
      %s179 = sphi 0, %s165
      %s183 = sphi 0, %s183
      %s185 = sphi 0, %s183
      %s186 = sphi 0, %s185
      %s200 = sphi 0, %s186
      %s204 = sphi 0, %s204
      %s206 = sphi 0, %s204
      %s207 = sphi 0, %s206
      %s221 = sphi 0, %s207
      %s225 = sphi 0, %s225
      %s227 = sphi 0, %s225
      %s228 = sphi 0, %s227
      %s242 = sphi 0, %s228
      %s248 = sphi 0, %s250
      %s251 = sphi 0, %s248
      %s252 = sphi 0, %s251
      %s268 = sphi 0, %s252
    $region4: #{tpu_custom_call.1} parent=1 // loop_header_branch
      %26 = sbr.rel (%p24) target = $region8
    $region5: #{tpu_custom_call.1} parent=1 // loop_body
      %s28 = ssub.s32 %s23, 1
      %s29 = ssub.s32 %s23, 2
      %s30 = sadd.s32 %s23, 1
      %s31 = ssub.s32 %s23, %s30
      %p32 = scmp.eq.s32.totalorder %s31, 0
      %s34 = sadd.s32 %s33, 1
      %s35 = scalar_select %p32, %s33, %s34
      %p38 = pneg %p32
      %p39 = scmp.eq.s32.totalorder %s23, 1
      %p40 = por %p38, %p39
      %p41 = scmp.ne.s32.totalorder %s33, %s36
      %p42 = scmp.eq.s32.totalorder %s23, 0
      %p43 = por %p41, %p42
      %p44 = scmp.ne.s32.totalorder %s33, %s36
      %p45 = scmp.eq.s32.totalorder %s28, 1
      %p46 = por %p44, %p45
      %p47 = scmp.ne.s32.totalorder %s36, %s37
      %p48 = scmp.eq.s32.totalorder %s28, 0
      %p49 = por %p47, %p48
      %p50 = scmp.ne.s32.totalorder %s36, %s37
      %p51 = scmp.eq.s32.totalorder %s29, 1
      %p52 = por %p50, %p51
      %p54 = scmp.ne.s32.totalorder %s37, %s53
      %p55 = scmp.eq.s32.totalorder %s29, 0
      %p56 = por %p54, %p55
      %s58 = sadd.s32 %s57, 1
      %p61 = scmp.eq.s32.totalorder %s23, 1
      %p62 = scmp.ne.s32.totalorder %s57, %s59
      %p63 = scmp.eq.s32.totalorder %s23, 0
      %p64 = por %p62, %p63
      %p65 = scmp.ne.s32.totalorder %s57, %s59
      %p66 = scmp.eq.s32.totalorder %s28, 1
      %p67 = por %p65, %p66
      %p68 = scmp.ne.s32.totalorder %s59, %s60
      %p69 = scmp.eq.s32.totalorder %s28, 0
      %p70 = por %p68, %p69
      %p71 = scmp.ne.s32.totalorder %s59, %s60
      %p72 = scmp.eq.s32.totalorder %s29, 1
      %p73 = por %p71, %p72
      %p75 = scmp.ne.s32.totalorder %s60, %s74
      %p76 = scmp.eq.s32.totalorder %s29, 0
      %p77 = por %p75, %p76
      %s79 = sadd.s32 %s78, 1
      %p82 = scmp.eq.s32.totalorder %s23, 1
      %p83 = scmp.ne.s32.totalorder %s78, %s80
      %p84 = scmp.eq.s32.totalorder %s23, 0
      %p85 = por %p83, %p84
      %p86 = scmp.ne.s32.totalorder %s78, %s80
      %p87 = scmp.eq.s32.totalorder %s28, 1
      %p88 = por %p86, %p87
      %p89 = scmp.ne.s32.totalorder %s80, %s81
      %p90 = scmp.eq.s32.totalorder %s28, 0
      %p91 = por %p89, %p90
      %p92 = scmp.ne.s32.totalorder %s80, %s81
      %p93 = scmp.eq.s32.totalorder %s29, 1
      %p94 = por %p92, %p93
      %p96 = scmp.ne.s32.totalorder %s81, %s95
      %p97 = scmp.eq.s32.totalorder %s29, 0
      %p98 = por %p96, %p97
      %s100 = sadd.s32 %s99, 1
      %p103 = scmp.eq.s32.totalorder %s23, 1
      %p104 = scmp.ne.s32.totalorder %s99, %s101
      %p105 = scmp.eq.s32.totalorder %s23, 0
      %p106 = por %p104, %p105
      %p107 = scmp.ne.s32.totalorder %s99, %s101
      %p108 = scmp.eq.s32.totalorder %s28, 1
      %p109 = por %p107, %p108
      %p110 = scmp.ne.s32.totalorder %s101, %s102
      %p111 = scmp.eq.s32.totalorder %s28, 0
      %p112 = por %p110, %p111
      %p113 = scmp.ne.s32.totalorder %s101, %s102
      %p114 = scmp.eq.s32.totalorder %s29, 1
      %p115 = por %p113, %p114
      %p117 = scmp.ne.s32.totalorder %s102, %s116
      %p118 = scmp.eq.s32.totalorder %s29, 0
      %p119 = por %p117, %p118
      %s121 = sadd.s32 %s120, 1
      %p124 = scmp.eq.s32.totalorder %s23, 1
      %p125 = scmp.ne.s32.totalorder %s120, %s122
      %p126 = scmp.eq.s32.totalorder %s23, 0
      %p127 = por %p125, %p126
      %p128 = scmp.ne.s32.totalorder %s120, %s122
      %p129 = scmp.eq.s32.totalorder %s28, 1
      %p130 = por %p128, %p129
      %p131 = scmp.ne.s32.totalorder %s122, %s123
      %p132 = scmp.eq.s32.totalorder %s28, 0
      %p133 = por %p131, %p132
      %p134 = scmp.ne.s32.totalorder %s122, %s123
      %p135 = scmp.eq.s32.totalorder %s29, 1
      %p136 = por %p134, %p135
      %p138 = scmp.ne.s32.totalorder %s123, %s137
      %p139 = scmp.eq.s32.totalorder %s29, 0
      %p140 = por %p138, %p139
      %s142 = sadd.s32 %s141, 1
      %p145 = scmp.eq.s32.totalorder %s23, 1
      %p146 = scmp.ne.s32.totalorder %s141, %s143
      %p147 = scmp.eq.s32.totalorder %s23, 0
      %p148 = por %p146, %p147
      %p149 = scmp.ne.s32.totalorder %s141, %s143
      %p150 = scmp.eq.s32.totalorder %s28, 1
      %p151 = por %p149, %p150
      %p152 = scmp.ne.s32.totalorder %s143, %s144
      %p153 = scmp.eq.s32.totalorder %s28, 0
      %p154 = por %p152, %p153
      %p155 = scmp.ne.s32.totalorder %s143, %s144
      %p156 = scmp.eq.s32.totalorder %s29, 1
      %p157 = por %p155, %p156
      %p159 = scmp.ne.s32.totalorder %s144, %s158
      %p160 = scmp.eq.s32.totalorder %s29, 0
      %p161 = por %p159, %p160
      %s163 = sadd.s32 %s162, 1
      %p166 = scmp.eq.s32.totalorder %s23, 1
      %p167 = scmp.ne.s32.totalorder %s162, %s164
      %p168 = scmp.eq.s32.totalorder %s23, 0
      %p169 = por %p167, %p168
      %p170 = scmp.ne.s32.totalorder %s162, %s164
      %p171 = scmp.eq.s32.totalorder %s28, 1
      %p172 = por %p170, %p171
      %p173 = scmp.ne.s32.totalorder %s164, %s165
      %p174 = scmp.eq.s32.totalorder %s28, 0
      %p175 = por %p173, %p174
      %p176 = scmp.ne.s32.totalorder %s164, %s165
      %p177 = scmp.eq.s32.totalorder %s29, 1
      %p178 = por %p176, %p177
      %p180 = scmp.ne.s32.totalorder %s165, %s179
      %p181 = scmp.eq.s32.totalorder %s29, 0
      %p182 = por %p180, %p181
      %s184 = sadd.s32 %s183, 1
      %p187 = scmp.eq.s32.totalorder %s23, 1
      %p188 = scmp.ne.s32.totalorder %s183, %s185
      %p189 = scmp.eq.s32.totalorder %s23, 0
      %p190 = por %p188, %p189
      %p191 = scmp.ne.s32.totalorder %s183, %s185
      %p192 = scmp.eq.s32.totalorder %s28, 1
      %p193 = por %p191, %p192
      %p194 = scmp.ne.s32.totalorder %s185, %s186
      %p195 = scmp.eq.s32.totalorder %s28, 0
      %p196 = por %p194, %p195
      %p197 = scmp.ne.s32.totalorder %s185, %s186
      %p198 = scmp.eq.s32.totalorder %s29, 1
      %p199 = por %p197, %p198
      %p201 = scmp.ne.s32.totalorder %s186, %s200
      %p202 = scmp.eq.s32.totalorder %s29, 0
      %p203 = por %p201, %p202
      %s205 = sadd.s32 %s204, 1
      %p208 = scmp.eq.s32.totalorder %s23, 1
      %p209 = scmp.ne.s32.totalorder %s204, %s206
      %p210 = scmp.eq.s32.totalorder %s23, 0
      %p211 = por %p209, %p210
      %p212 = scmp.ne.s32.totalorder %s204, %s206
      %p213 = scmp.eq.s32.totalorder %s28, 1
      %p214 = por %p212, %p213
      %p215 = scmp.ne.s32.totalorder %s206, %s207
      %p216 = scmp.eq.s32.totalorder %s28, 0
      %p217 = por %p215, %p216
      %p218 = scmp.ne.s32.totalorder %s206, %s207
      %p219 = scmp.eq.s32.totalorder %s29, 1
      %p220 = por %p218, %p219
      %p222 = scmp.ne.s32.totalorder %s207, %s221
      %p223 = scmp.eq.s32.totalorder %s29, 0
      %p224 = por %p222, %p223
      %s226 = sadd.s32 %s225, 1
      %p229 = scmp.eq.s32.totalorder %s23, 1
      %p230 = scmp.ne.s32.totalorder %s225, %s227
      %p231 = scmp.eq.s32.totalorder %s23, 0
      %p232 = por %p230, %p231
      %p233 = scmp.ne.s32.totalorder %s225, %s227
      %p234 = scmp.eq.s32.totalorder %s28, 1
      %p235 = por %p233, %p234
      %p236 = scmp.ne.s32.totalorder %s227, %s228
      %p237 = scmp.eq.s32.totalorder %s28, 0
      %p238 = por %p236, %p237
      %p239 = scmp.ne.s32.totalorder %s227, %s228
      %p240 = scmp.eq.s32.totalorder %s29, 1
      %p241 = por %p239, %p240
      %p243 = scmp.ne.s32.totalorder %s228, %s242
      %p244 = scmp.eq.s32.totalorder %s29, 0
      %p245 = por %p243, %p244
      %s246 = ssub.s32 %s23, %s30
      %p247 = scmp.eq.s32.totalorder %s246, 0
      %s249 = sadd.s32 %s248, 1
      %s250 = scalar_select %p247, %s248, %s249
      %p253 = pneg %p247
      %p254 = scmp.eq.s32.totalorder %s23, 1
      %p255 = por %p253, %p254
      %p256 = scmp.ne.s32.totalorder %s248, %s251
      %p257 = scmp.eq.s32.totalorder %s23, 0
      %p258 = por %p256, %p257
      %p259 = scmp.ne.s32.totalorder %s248, %s251
      %p260 = scmp.eq.s32.totalorder %s28, 1
      %p261 = por %p259, %p260
      %p262 = scmp.ne.s32.totalorder %s251, %s252
      %p263 = scmp.eq.s32.totalorder %s28, 0
      %p264 = por %p262, %p263
      %p265 = scmp.ne.s32.totalorder %s251, %s252
      %p266 = scmp.eq.s32.totalorder %s29, 1
      %p267 = por %p265, %p266
      %p269 = scmp.ne.s32.totalorder %s252, %s268
      %p270 = scmp.eq.s32.totalorder %s29, 0
      %p271 = por %p269, %p270
      %p272 = scmp.le.s32.totalorder 1, %s23
      %p273 = scmp.lt.s32.totalorder %s23, 3
      %p274 = pnand %p272, %p273
      %p275 = pneg %p274
      // Predicated region
      $region9: #{tpu_custom_call.1} parent=5 // pred_check
        _
      $region10: #{tpu_custom_call.1} parent=5 // pred_check_branch
        %277 = sbr.rel (%p274) target = $region12
      $region11: #{tpu_custom_call.1} parent=5 // pred_region
        %s278 = ssub.s32 %s23, 1
        // Predicated region
        $region13: #{tpu_custom_call.1} parent=11 // pred_check
          %p279 = pneg %p70
        $region14: #{tpu_custom_call.1} parent=11 // pred_check_branch
          %281 = sbr.rel (%p279) target = $region16
        $region15: #{tpu_custom_call.1} parent=11 // pred_region
          %s283 = ssub.s32 512, 512
          %284 = vsyncadd [#allocation6], %s283
          %s285 = sshll.u32 [#allocation5], 4
          %s286 = int_to_ptr.vmem [resolvable:$true] %s285
          %291 = dma.hbm_to_vmem [thread:$0]  %s1, 512, %s286, [#allocation6], 256, 256, 16
        $region16: #{tpu_custom_call.1} parent=11 // pred_fallthru
          _
        // Predicated region
        $region17: #{tpu_custom_call.1} parent=11 // pred_check
          %p292 = pneg %p91
        $region18: #{tpu_custom_call.1} parent=11 // pred_check_branch
          %294 = sbr.rel (%p292) target = $region20
        $region19: #{tpu_custom_call.1} parent=11 // pred_region
          _
        $region20: #{tpu_custom_call.1} parent=11 // pred_fallthru
          _
        // Predicated region
        $region21: #{tpu_custom_call.1} parent=11 // pred_check
          %p295 = pneg %p112
        $region22: #{tpu_custom_call.1} parent=11 // pred_check_branch
          %297 = sbr.rel (%p295) target = $region24
        $region23: #{tpu_custom_call.1} parent=11 // pred_region
          _
        $region24: #{tpu_custom_call.1} parent=11 // pred_fallthru
          _
        // Predicated region
        $region25: #{tpu_custom_call.1} parent=11 // pred_check
          %p298 = pneg %p133
        $region26: #{tpu_custom_call.1} parent=11 // pred_check_branch
          %300 = sbr.rel (%p298) target = $region28
        $region27: #{tpu_custom_call.1} parent=11 // pred_region
          _
        $region28: #{tpu_custom_call.1} parent=11 // pred_fallthru
          _
        // Predicated region
        $region29: #{tpu_custom_call.1} parent=11 // pred_check
          %p301 = pneg %p154
        $region30: #{tpu_custom_call.1} parent=11 // pred_check_branch
          %303 = sbr.rel (%p301) target = $region32
        $region31: #{tpu_custom_call.1} parent=11 // pred_region
          _
        $region32: #{tpu_custom_call.1} parent=11 // pred_fallthru
          _
        // Predicated region
        $region33: #{tpu_custom_call.1} parent=11 // pred_check
          %p304 = pneg %p175
        $region34: #{tpu_custom_call.1} parent=11 // pred_check_branch
          %306 = sbr.rel (%p304) target = $region36
        $region35: #{tpu_custom_call.1} parent=11 // pred_region
          %s308 = ssub.s32 768, 768
          %309 = vsyncadd [#allocation6], %s308
          %s310 = sshll.u32 [#allocation7], 4
          %s311 = int_to_ptr.vmem [resolvable:$true] %s310
          %316 = dma.hbm_to_vmem [thread:$0]  %s6, 768, %s311, [#allocation6], 384, 384, 24
        $region36: #{tpu_custom_call.1} parent=11 // pred_fallthru
          _
        // Predicated region
        $region37: #{tpu_custom_call.1} parent=11 // pred_check
          %p317 = pneg %p196
        $region38: #{tpu_custom_call.1} parent=11 // pred_check_branch
          %319 = sbr.rel (%p317) target = $region40
        $region39: #{tpu_custom_call.1} parent=11 // pred_region
          _
        $region40: #{tpu_custom_call.1} parent=11 // pred_fallthru
          _
        // Predicated region
        $region41: #{tpu_custom_call.1} parent=11 // pred_check
          %p320 = pneg %p217
        $region42: #{tpu_custom_call.1} parent=11 // pred_check_branch
          %322 = sbr.rel (%p320) target = $region44
        $region43: #{tpu_custom_call.1} parent=11 // pred_region
          _
        $region44: #{tpu_custom_call.1} parent=11 // pred_fallthru
          _
        // Predicated region
        $region45: #{tpu_custom_call.1} parent=11 // pred_check
          %p323 = pneg %p238
        $region46: #{tpu_custom_call.1} parent=11 // pred_check_branch
          %325 = sbr.rel (%p323) target = $region48
        $region47: #{tpu_custom_call.1} parent=11 // pred_region
          _
        $region48: #{tpu_custom_call.1} parent=11 // pred_fallthru
          _
      $region12: #{tpu_custom_call.1} parent=5 // pred_fallthru
        _
      %p326 = scmp.lt.s32.totalorder %s23, 2
      // Predicated region
      $region49: #{tpu_custom_call.1} parent=5 // pred_check
        %p327 = pneg %p326
      $region50: #{tpu_custom_call.1} parent=5 // pred_check_branch
        %329 = sbr.rel (%p327) target = $region52
      $region51: #{tpu_custom_call.1} parent=5 // pred_region
        // Predicated region
        $region53: #{tpu_custom_call.1} parent=51 // pred_check
          %p330 = pneg %p43
        $region54: #{tpu_custom_call.1} parent=51 // pred_check_branch
          %332 = sbr.rel (%p330) target = $region56
        $region55: #{tpu_custom_call.1} parent=51 // pred_region
          %s333 = sand.u32 %s33, 1
          %s334 = scalar_lea.sflag [#allocation3], %s333
          %s335 = sand.u32 %s33, 1
          %s336 = smul.addr %s335, 16
          %s337 = scalar_lea.vmem [#allocation2], %s336
          %s339 = ssub.s32 256, 256
          %340 = vsyncadd %s334, %s339
          %s341 = smul.addr %s23, 2
          %s342 = smul.addr %s341, 128
          %s343 = scalar_lea.hbm %s0, %s342
          %s345 = sshll.u32 %s337, 4
          %s346 = int_to_ptr.vmem [resolvable:$true] %s345
          %348 = dma.hbm_to_vmem [thread:$0]  %s343, 256, %s346, %s334
        $region56: #{tpu_custom_call.1} parent=51 // pred_fallthru
          _
      $region52: #{tpu_custom_call.1} parent=5 // pred_fallthru
        _
      %p349 = scmp.le.s32.totalorder 1, %s23
      %p350 = scmp.lt.s32.totalorder %s23, 3
      %p351 = pnand %p349, %p350
      %p352 = pneg %p351
      // Predicated region
      $region57: #{tpu_custom_call.1} parent=5 // pred_check
        _
      $region58: #{tpu_custom_call.1} parent=5 // pred_check_branch
        %354 = sbr.rel (%p351) target = $region60
      $region59: #{tpu_custom_call.1} parent=5 // pred_region
        %s355 = ssub.s32 %s23, 1
        %s356 = sand.u32 %s36, 1
        %s357 = scalar_lea.sflag [#allocation3], %s356
        %s358 = sand.u32 %s36, 1
        %s359 = smul.addr %s358, 16
        %s360 = scalar_lea.vmem [#allocation2], %s359
        // Predicated region
        $region61: #{tpu_custom_call.1} parent=59 // pred_check
          %p361 = pneg %p49
        $region62: #{tpu_custom_call.1} parent=59 // pred_check_branch
          %363 = sbr.rel (%p361) target = $region64
        $region63: #{tpu_custom_call.1} parent=59 // pred_region
          %364 = dma.done %s357, 256
        $region64: #{tpu_custom_call.1} parent=59 // pred_fallthru
          _
        // Predicated region
        $region65: #{tpu_custom_call.1} parent=59 // pred_check
          %p365 = pneg %p70
        $region66: #{tpu_custom_call.1} parent=59 // pred_check_branch
          %367 = sbr.rel (%p365) target = $region68
        $region67: #{tpu_custom_call.1} parent=59 // pred_region
          %368 = dma.done [#allocation6], 512
        $region68: #{tpu_custom_call.1} parent=59 // pred_fallthru
          _
        // Predicated region
        $region69: #{tpu_custom_call.1} parent=59 // pred_check
          %p369 = pneg %p175
        $region70: #{tpu_custom_call.1} parent=59 // pred_check_branch
          %371 = sbr.rel (%p369) target = $region72
        $region71: #{tpu_custom_call.1} parent=59 // pred_region
          %372 = dma.done [#allocation6], 768
        $region72: #{tpu_custom_call.1} parent=59 // pred_fallthru
          _
        %s373 = sand.u32 %s36, 1
        %s374 = scalar_lea.sflag [#allocation3], %s373
        %s375 = sand.u32 %s36, 1
        %s376 = smul.addr %s375, 16
        %s377 = scalar_lea.vmem [#allocation2], %s376
        %p378 = pneg %p49
        %p379 = pneg %p46
        %p380 = pneg %p70
        %p381 = pneg %p67
        %p382 = pneg %p91
        %p383 = pneg %p88
        %p384 = pneg %p112
        %p385 = pneg %p109
        %p386 = pneg %p133
        %p387 = pneg %p130
        %p388 = pneg %p154
        %p389 = pneg %p151
        %p390 = pneg %p175
        %p391 = pneg %p172
        %p392 = pneg %p196
        %p393 = pneg %p193
        %p394 = pneg %p217
        %p395 = pneg %p214
        %p396 = pneg %p238
        %p397 = pneg %p235
        %p398 = pneg %p264
        %p399 = pneg %p261
        %s400 = sand.u32 %s251, 1
        %s401 = scalar_lea.sflag [#allocation4], %s400
        %s402 = sand.u32 %s251, 1
        %s403 = smul.addr %s402, 4
        %s404 = scalar_lea.vmem [#allocation8], %s403
        %v405 = vld [vmem:[#allocation5] sm:$0xff]
        %v406 = vld [vmem:[#allocation5 + $0x8] sm:$0xff]
        %v407 = vld [vmem:[#allocation5 + $0x10] sm:$0x1]
        %v408 = vld [vmem:[#allocation5 + $0x18] sm:$0x1]
        %v409 = vld [vmem:[%s360] sm:$0xff]
        %v410 = vld [vmem:[%s360 + $0x8] sm:$0xff]
        %411 = vrot.lane.b32.xlu0 %v409, 17
        %v412 = vpop.permute.xlu0 %411
        %413 = vrot.lane.b32.xlu0 %v410, 17
        %v414 = vpop.permute.xlu0 %413
        %v415 = vlaneseq
        %v416 = vand.u32 %v415, 127
        %vm417 = vcmp.lt.s32.totalorder %v416, 17
        %v418 = vsel %vm417, %v412, %v414
        %v419 = vsel %vm417, %v414, %v412
        %v420 = vlaneseq
        %v421 = vshrl.u32 %v420, 7
        %v422 = vsub.s32 0, %v421
        %v423 = vrot.slane %v405, %v422
        %v424 = vlaneseq
        %v425 = vshrl.u32 %v424, 7
        %v426 = vsub.s32 0, %v425
        %v427 = vrot.slane %v406, %v426
        %v428 = vmul.f32 %v419, %v423
        %v429 = vmul.f32 %v418, %v427
        %430 = vrot.lane.b32.xlu0 %v409, 16
        %v431 = vpop.permute.xlu0 %430
        %432 = vrot.lane.b32.xlu0 %v410, 16
        %v433 = vpop.permute.xlu0 %432
        %vm434 = vcmp.lt.s32.totalorder %v416, 16
        %v435 = vsel %vm434, %v431, %v433
        %v436 = vsel %vm434, %v433, %v431
        %v437 = vlaneseq
        %v438 = vshrl.u32 %v437, 7
        %v439 = vsub.s32 1, %v438
        %v440 = vrot.slane %v405, %v439
        %v441 = vlaneseq
        %v442 = vshrl.u32 %v441, 7
        %v443 = vsub.s32 1, %v442
        %v444 = vrot.slane %v406, %v443
        %v445 = vmul.f32 %v436, %v440
        %v446 = vmul.f32 %v435, %v444
        %447 = vrot.lane.b32.xlu0 %v409, 15
        %v448 = vpop.permute.xlu0 %447
        %449 = vrot.lane.b32.xlu0 %v410, 15
        %v450 = vpop.permute.xlu0 %449
        %vm451 = vcmp.lt.s32.totalorder %v416, 15
        %v452 = vsel %vm451, %v448, %v450
        %v453 = vsel %vm451, %v450, %v448
        %v454 = vlaneseq
        %v455 = vshrl.u32 %v454, 7
        %v456 = vsub.s32 2, %v455
        %v457 = vrot.slane %v405, %v456
        %v458 = vlaneseq
        %v459 = vshrl.u32 %v458, 7
        %v460 = vsub.s32 2, %v459
        %v461 = vrot.slane %v406, %v460
        %v462 = vmul.f32 %v453, %v457
        %v463 = vmul.f32 %v452, %v461
        %464 = vrot.lane.b32.xlu0 %v409, 1
        %v465 = vpop.permute.xlu0 %464
        %466 = vrot.lane.b32.xlu0 %v410, 1
        %v467 = vpop.permute.xlu0 %466
        %vm468 = vcmp.lt.s32.totalorder %v416, 1
        %v469 = vsel %vm468, %v465, %v467
        %v470 = vsel %vm468, %v467, %v465
        %v471 = vlaneseq
        %v472 = vshrl.u32 %v471, 7
        %v473 = vsub.s32 3, %v472
        %v474 = vrot.slane %v405, %v473
        %v475 = vlaneseq
        %v476 = vshrl.u32 %v475, 7
        %v477 = vsub.s32 3, %v476
        %v478 = vrot.slane %v406, %v477
        %v479 = vmul.f32 %v470, %v474
        %v480 = vmul.f32 %v469, %v478
        %481 = vrot.lane.b32.xlu0 %v409, 127
        %v482 = vpop.permute.xlu0 %481
        %483 = vrot.lane.b32.xlu0 %v410, 127
        %v484 = vpop.permute.xlu0 %483
        %vm485 = vcmp.lt.s32.totalorder %v416, 127
        %v486 = vsel %vm485, %v482, %v484
        %v487 = vsel %vm485, %v484, %v482
        %v488 = vlaneseq
        %v489 = vshrl.u32 %v488, 7
        %v490 = vsub.s32 5, %v489
        %v491 = vrot.slane %v405, %v490
        %v492 = vlaneseq
        %v493 = vshrl.u32 %v492, 7
        %v494 = vsub.s32 5, %v493
        %v495 = vrot.slane %v406, %v494
        %v496 = vmul.f32 %v486, %v491
        %v497 = vmul.f32 %v487, %v495
        %498 = vrot.lane.b32.xlu0 %v409, 113
        %v499 = vpop.permute.xlu0 %498
        %500 = vrot.lane.b32.xlu0 %v410, 113
        %v501 = vpop.permute.xlu0 %500
        %vm502 = vcmp.lt.s32.totalorder %v416, 113
        %v503 = vsel %vm502, %v499, %v501
        %v504 = vsel %vm502, %v501, %v499
        %v505 = vlaneseq
        %v506 = vshrl.u32 %v505, 7
        %v507 = vsub.s32 6, %v506
        %v508 = vrot.slane %v405, %v507
        %v509 = vlaneseq
        %v510 = vshrl.u32 %v509, 7
        %v511 = vsub.s32 6, %v510
        %v512 = vrot.slane %v406, %v511
        %v513 = vmul.f32 %v503, %v508
        %v514 = vmul.f32 %v504, %v512
        %515 = vrot.lane.b32.xlu0 %v409, 112
        %v516 = vpop.permute.xlu0 %515
        %517 = vrot.lane.b32.xlu0 %v410, 112
        %v518 = vpop.permute.xlu0 %517
        %vm519 = vcmp.lt.s32.totalorder %v416, 112
        %v520 = vsel %vm519, %v516, %v518
        %v521 = vsel %vm519, %v518, %v516
        %v522 = vlaneseq
        %v523 = vshrl.u32 %v522, 7
        %v524 = vsub.s32 7, %v523
        %v525 = vrot.slane %v405, %v524
        %v526 = vlaneseq
        %v527 = vshrl.u32 %v526, 7
        %v528 = vsub.s32 7, %v527
        %v529 = vrot.slane %v406, %v528
        %v530 = vmul.f32 %v520, %v525
        %v531 = vmul.f32 %v521, %v529
        %532 = vrot.lane.b32.xlu0 %v409, 111
        %v533 = vpop.permute.xlu0 %532
        %534 = vrot.lane.b32.xlu0 %v410, 111
        %v535 = vpop.permute.xlu0 %534
        %vm536 = vcmp.lt.s32.totalorder %v416, 111
        %v537 = vsel %vm536, %v533, %v535
        %v538 = vsel %vm536, %v535, %v533
        %v539 = vlaneseq
        %v540 = vshrl.u32 %v539, 7
        %v541 = vsub.s32 0, %v540
        %v542 = vrot.slane %v407, %v541
        %v543 = vlaneseq
        %v544 = vshrl.u32 %v543, 7
        %v545 = vsub.s32 0, %v544
        %v546 = vrot.slane %v408, %v545
        %v547 = vmul.f32 %v537, %v542
        %v548 = vmul.f32 %v538, %v546
        %v549 = vld [vmem:[%s2] sm:$0xff]
        %v550 = vld [vmem:[%s2 + $0x8] sm:$0xff]
        %v551 = vld [vmem:[%s3] sm:$0xff]
        %v552 = vld [vmem:[%s3 + $0x8] sm:$0xff]
        %554 = vset.pattern.permute.xlu0 0
        %555 = vperm.xlu0 %554, %v551
        %v556 = vpop.permute.xlu0 %555
        %559 = vset.pattern.permute.xlu0 0
        %560 = vperm.xlu0 %559, %v552
        %v561 = vpop.permute.xlu0 %560
        %vm563 = vcmask 588800
        %v565 = vsel %vm563, %v549, 0
        %v568 = vsel %vm563, %v550, 0
        %570 = vmatprep.subr.mxu0 %v429
        %571 = vmatpush1.msra.mxu0 %v428
        %572 = vmatprep.subr.mxu0 %v446
        %573 = vmatpush1.msra.mxu0 %v445
        %574 = vmatprep.subr.mxu0 %v463
        %575 = vmatpush1.msra.mxu0 %v462
        %576 = vmatprep.subr.mxu0 %v480
        %577 = vmatpush1.msra.mxu0 %v479
        %578 = vmatprep.subr.mxu0 %v410
        %579 = vmatpush1.msra.mxu0 %v409
        %580 = vmatprep.subr.mxu0 %v497
        %581 = vmatpush1.msra.mxu0 %v496
        %582 = vmatprep.subr.mxu0 %v514
        %583 = vmatpush1.msra.mxu0 %v513
        %584 = vmatprep.subr.mxu0 %v531
        %585 = vmatpush1.msra.mxu0 %v530
        %586 = vmatprep.subr.mxu0 %v548
        %587 = vmatpush1.msra.mxu0 %v547
        %588 = vmatprep.subr.mxu0 0.0
        %589 = vmatpush1.msra.mxu0 0.0
        %590 = vmatprep.subr.mxu0 0.0
        %591 = vmatpush1.msra.mxu0 0.0
        %592 = vmatprep.subr.mxu0 0.0
        %593 = vmatpush1.msra.mxu0 0.0
        %594 = vmatprep.subr.mxu0 0.0
        %595 = vmatpush1.msra.mxu0 0.0
        %596 = vmatprep.subr.mxu0 0.0
        %597 = vmatpush1.msra.mxu0 0.0
        %598 = vmatprep.subr.mxu0 0.0
        %599 = vmatpush1.msra.mxu0 0.0
        %600 = vmatprep.subr.mxu0 0.0
        %601 = vmatpush1.msra.mxu0 0.0
        %602 = vmatprep.subr.mxu0 0.0
        %603 = vmatpush1.msra.mxu0 0.0
        %604 = vmatprep.subr.mxu0 0.0
        %605 = vmatpush1.msra.mxu0 0.0
        %606 = vmatprep.subr.mxu0 0.0
        %607 = vmatpush1.msra.mxu0 0.0
        %608 = vmatprep.subr.mxu0 0.0
        %609 = vmatpush1.msra.mxu0 0.0
        %610 = vmatprep.subr.mxu0 0.0
        %611 = vmatpush1.msra.mxu0 0.0
        %612 = vmatprep.subr.mxu0 0.0
        %613 = vmatpush1.msra.mxu0 0.0
        %614 = vmatprep.subr.mxu0 0.0
        %615 = vmatpush1.msra.mxu0 0.0
        %616 = vmatprep.subr.mxu0 0.0
        %617 = vmatpush1.msra.mxu0 0.0
        %618 = vmatprep.subr.mxu0 0.0
        %619 = vmatpush1.msra.mxu0 0.0
        %620 = vmatprep.subr.mxu0 0.0
        %621 = vmatpush1.msra.mxu0 0.0
        %622 = vmatprep.subr.mxu0 0.0
        %623 = vmatpush1.msra.mxu0 0.0
        %624 = vmatprep.subr.mxu0 0.0
        %625 = vmatpush1.msra.mxu0 0.0
        %626 = vmatprep.subr.mxu0 0.0
        %627 = vmatpush1.msra.mxu0 0.0
        %628 = vmatprep.subr.mxu0 0.0
        %629 = vmatpush1.msra.mxu0 0.0
        %630 = vmatprep.subr.mxu0 0.0
        %631 = vmatpush1.msra.mxu0 0.0
        %632 = vmatprep.subr.mxu0 0.0
        %633 = vmatpush1.msra.mxu0 0.0
        %634 = vmatprep.mubr.f32.mxu0 0.0
        %635 = vmatmul.mubr.f32.gmra.mrb[0].mxu0 %v565
        %v636 = vpop.f32.mrb[0].mxu0
        %v637 = vadd.f32 %v556, %v636
        %v638 = vpop.f32.mrb[0].mxu0
        %v639 = vadd.f32 %v556, %v638
        %640 = vmatprep.mubr.f32.mxu0 0.0
        %641 = vmatmul.mubr.f32.gmra.mrb[0].mxu0 %v568
        %v642 = vpop.f32.mrb[0].mxu0
        %v643 = vadd.f32 %v561, %v642
        %v644 = vpop.f32.mrb[0].mxu0
        %v645 = vadd.f32 %v561, %v644
        %646 = vdwg.mxu0
        %v647 = vmax.f32 %v637, 0.0
        %v648 = vmax.f32 %v639, 0.0
        %v649 = vmax.f32 %v643, 0.0
        %v650 = vmax.f32 %v645, 0.0
        %651 = vrot.lane.b32.xlu0 %v647, 17
        %v652 = vpop.permute.xlu0 %651
        %653 = vrot.lane.b32.xlu0 %v649, 17
        %v654 = vpop.permute.xlu0 %653
        %655 = vrot.lane.b32.xlu0 %v648, 17
        %v656 = vpop.permute.xlu0 %655
        %657 = vrot.lane.b32.xlu0 %v650, 17
        %v658 = vpop.permute.xlu0 %657
        %v659 = vsel %vm417, %v652, %v656
        %v660 = vsel %vm417, %v654, %v658
        %v661 = vsel %vm417, %v656, %v652
        %v662 = vsel %vm417, %v658, %v654
        %v663 = vmul.f32 %v661, %v423
        %v664 = vmul.f32 %v659, %v427
        %v665 = vmul.f32 %v662, %v423
        %v666 = vmul.f32 %v660, %v427
        %667 = vrot.lane.b32.xlu0 %v647, 16
        %v668 = vpop.permute.xlu0 %667
        %669 = vrot.lane.b32.xlu0 %v649, 16
        %v670 = vpop.permute.xlu0 %669
        %671 = vrot.lane.b32.xlu0 %v648, 16
        %v672 = vpop.permute.xlu0 %671
        %673 = vrot.lane.b32.xlu0 %v650, 16
        %v674 = vpop.permute.xlu0 %673
        %v675 = vsel %vm434, %v668, %v672
        %v676 = vsel %vm434, %v670, %v674
        %v677 = vsel %vm434, %v672, %v668
        %v678 = vsel %vm434, %v674, %v670
        %v679 = vmul.f32 %v677, %v440
        %v680 = vmul.f32 %v675, %v444
        %v681 = vmul.f32 %v678, %v440
        %v682 = vmul.f32 %v676, %v444
        %683 = vrot.lane.b32.xlu0 %v647, 15
        %v684 = vpop.permute.xlu0 %683
        %685 = vrot.lane.b32.xlu0 %v649, 15
        %v686 = vpop.permute.xlu0 %685
        %687 = vrot.lane.b32.xlu0 %v648, 15
        %v688 = vpop.permute.xlu0 %687
        %689 = vrot.lane.b32.xlu0 %v650, 15
        %v690 = vpop.permute.xlu0 %689
        %v691 = vsel %vm451, %v684, %v688
        %v692 = vsel %vm451, %v686, %v690
        %v693 = vsel %vm451, %v688, %v684
        %v694 = vsel %vm451, %v690, %v686
        %v695 = vmul.f32 %v693, %v457
        %v696 = vmul.f32 %v691, %v461
        %v697 = vmul.f32 %v694, %v457
        %v698 = vmul.f32 %v692, %v461
        %699 = vrot.lane.b32.xlu0 %v647, 1
        %v700 = vpop.permute.xlu0 %699
        %701 = vrot.lane.b32.xlu0 %v649, 1
        %v702 = vpop.permute.xlu0 %701
        %703 = vrot.lane.b32.xlu0 %v648, 1
        %v704 = vpop.permute.xlu0 %703
        %705 = vrot.lane.b32.xlu0 %v650, 1
        %v706 = vpop.permute.xlu0 %705
        %v707 = vsel %vm468, %v700, %v704
        %v708 = vsel %vm468, %v702, %v706
        %v709 = vsel %vm468, %v704, %v700
        %v710 = vsel %vm468, %v706, %v702
        %v711 = vmul.f32 %v709, %v474
        %v712 = vmul.f32 %v707, %v478
        %v713 = vmul.f32 %v710, %v474
        %v714 = vmul.f32 %v708, %v478
        %715 = vrot.lane.b32.xlu0 %v647, 127
        %v716 = vpop.permute.xlu0 %715
        %717 = vrot.lane.b32.xlu0 %v649, 127
        %v718 = vpop.permute.xlu0 %717
        %719 = vrot.lane.b32.xlu0 %v648, 127
        %v720 = vpop.permute.xlu0 %719
        %721 = vrot.lane.b32.xlu0 %v650, 127
        %v722 = vpop.permute.xlu0 %721
        %v723 = vsel %vm485, %v716, %v720
        %v724 = vsel %vm485, %v718, %v722
        %v725 = vsel %vm485, %v720, %v716
        %v726 = vsel %vm485, %v722, %v718
        %v727 = vmul.f32 %v723, %v491
        %v728 = vmul.f32 %v725, %v495
        %v729 = vmul.f32 %v724, %v491
        %v730 = vmul.f32 %v726, %v495
        %731 = vrot.lane.b32.xlu0 %v647, 113
        %v732 = vpop.permute.xlu0 %731
        %733 = vrot.lane.b32.xlu0 %v649, 113
        %v734 = vpop.permute.xlu0 %733
        %735 = vrot.lane.b32.xlu0 %v648, 113
        %v736 = vpop.permute.xlu0 %735
        %737 = vrot.lane.b32.xlu0 %v650, 113
        %v738 = vpop.permute.xlu0 %737
        %v739 = vsel %vm502, %v732, %v736
        %v740 = vsel %vm502, %v734, %v738
        %v741 = vsel %vm502, %v736, %v732
        %v742 = vsel %vm502, %v738, %v734
        %v743 = vmul.f32 %v739, %v508
        %v744 = vmul.f32 %v741, %v512
        %v745 = vmul.f32 %v740, %v508
        %v746 = vmul.f32 %v742, %v512
        %747 = vrot.lane.b32.xlu0 %v647, 112
        %v748 = vpop.permute.xlu0 %747
        %749 = vrot.lane.b32.xlu0 %v649, 112
        %v750 = vpop.permute.xlu0 %749
        %751 = vrot.lane.b32.xlu0 %v648, 112
        %v752 = vpop.permute.xlu0 %751
        %753 = vrot.lane.b32.xlu0 %v650, 112
        %v754 = vpop.permute.xlu0 %753
        %v755 = vsel %vm519, %v748, %v752
        %v756 = vsel %vm519, %v750, %v754
        %v757 = vsel %vm519, %v752, %v748
        %v758 = vsel %vm519, %v754, %v750
        %v759 = vmul.f32 %v755, %v525
        %v760 = vmul.f32 %v757, %v529
        %v761 = vmul.f32 %v756, %v525
        %v762 = vmul.f32 %v758, %v529
        %763 = vrot.lane.b32.xlu0 %v647, 111
        %v764 = vpop.permute.xlu0 %763
        %765 = vrot.lane.b32.xlu0 %v649, 111
        %v766 = vpop.permute.xlu0 %765
        %767 = vrot.lane.b32.xlu0 %v648, 111
        %v768 = vpop.permute.xlu0 %767
        %769 = vrot.lane.b32.xlu0 %v650, 111
        %v770 = vpop.permute.xlu0 %769
        %v771 = vsel %vm536, %v764, %v768
        %v772 = vsel %vm536, %v766, %v770
        %v773 = vsel %vm536, %v768, %v764
        %v774 = vsel %vm536, %v770, %v766
        %v775 = vmul.f32 %v771, %v542
        %v776 = vmul.f32 %v773, %v546
        %v777 = vmul.f32 %v772, %v542
        %v778 = vmul.f32 %v774, %v546
        %v779 = vld [vmem:[%s4] sm:$0xff]
        %v780 = vld [vmem:[%s4 + $0x8] sm:$0xff]
        %v781 = vld [vmem:[%s4 + $0x10] sm:$0xff]
        %v782 = vld [vmem:[%s4 + $0x18] sm:$0xff]
        %v783 = vld [vmem:[%s4 + $0x20] sm:$0xff]
        %v784 = vld [vmem:[%s4 + $0x28] sm:$0xff]
        %v785 = vld [vmem:[%s4 + $0x30] sm:$0xff]
        %v786 = vld [vmem:[%s4 + $0x38] sm:$0xff]
        %v787 = vld [vmem:[%s5] sm:$0xff]
        %v788 = vld [vmem:[%s5 + $0x8] sm:$0xff]
        %v789 = vld [vmem:[%s5 + $0x10] sm:$0xff]
        %v790 = vld [vmem:[%s5 + $0x18] sm:$0xff]
        %792 = vset.pattern.permute.xlu0 0
        %793 = vperm.xlu0 %792, %v787
        %v794 = vpop.permute.xlu0 %793
        %797 = vset.pattern.permute.xlu0 0
        %798 = vperm.xlu0 %797, %v788
        %v799 = vpop.permute.xlu0 %798
        %802 = vset.pattern.permute.xlu0 0
        %803 = vperm.xlu0 %802, %v789
        %v804 = vpop.permute.xlu0 %803
        %807 = vset.pattern.permute.xlu0 0
        %808 = vperm.xlu0 %807, %v790
        %v809 = vpop.permute.xlu0 %808
        %vm811 = vcmask 130048
        %v813 = vsel %vm811, %v780, 0
        %v816 = vsel %vm811, %v782, 0
        %v819 = vsel %vm811, %v784, 0
        %v822 = vsel %vm811, %v786, 0
        %824 = vmatprep.subr.mxu0 %v664
        %825 = vmatpush1.msra.mxu0 %v663
        %826 = vmatprep.subr.mxu0 %v666
        %827 = vmatpush1.msra.mxu0 %v665
        %828 = vmatprep.subr.mxu0 %v680
        %829 = vmatpush1.msra.mxu0 %v679
        %830 = vmatprep.subr.mxu0 %v682
        %831 = vmatpush1.msra.mxu0 %v681
        %832 = vmatprep.subr.mxu0 %v696
        %833 = vmatpush1.msra.mxu0 %v695
        %834 = vmatprep.subr.mxu0 %v698
        %835 = vmatpush1.msra.mxu0 %v697
        %836 = vmatprep.subr.mxu0 %v712
        %837 = vmatpush1.msra.mxu0 %v711
        %838 = vmatprep.subr.mxu0 %v714
        %839 = vmatpush1.msra.mxu0 %v713
        %840 = vmatprep.subr.mxu0 %v648
        %841 = vmatpush1.msra.mxu0 %v647
        %842 = vmatprep.subr.mxu0 %v650
        %843 = vmatpush1.msra.mxu0 %v649
        %844 = vmatprep.subr.mxu0 %v728
        %845 = vmatpush1.msra.mxu0 %v727
        %846 = vmatprep.subr.mxu0 %v730
        %847 = vmatpush1.msra.mxu0 %v729
        %848 = vmatprep.subr.mxu0 %v744
        %849 = vmatpush1.msra.mxu0 %v743
        %850 = vmatprep.subr.mxu0 %v746
        %851 = vmatpush1.msra.mxu0 %v745
        %852 = vmatprep.subr.mxu0 %v760
        %853 = vmatpush1.msra.mxu0 %v759
        %854 = vmatprep.subr.mxu0 %v762
        %855 = vmatpush1.msra.mxu0 %v761
        %856 = vmatprep.subr.mxu0 %v776
        %857 = vmatpush1.msra.mxu0 %v775
        %858 = vmatprep.subr.mxu0 %v778
        %859 = vmatpush1.msra.mxu0 %v777
        %860 = vmatprep.subr.mxu0 0.0
        %861 = vmatpush1.msra.mxu0 0.0
        %862 = vmatprep.subr.mxu0 0.0
        %863 = vmatpush1.msra.mxu0 0.0
        %864 = vmatprep.subr.mxu0 0.0
        %865 = vmatpush1.msra.mxu0 0.0
        %866 = vmatprep.subr.mxu0 0.0
        %867 = vmatpush1.msra.mxu0 0.0
        %868 = vmatprep.subr.mxu0 0.0
        %869 = vmatpush1.msra.mxu0 0.0
        %870 = vmatprep.subr.mxu0 0.0
        %871 = vmatpush1.msra.mxu0 0.0
        %872 = vmatprep.subr.mxu0 0.0
        %873 = vmatpush1.msra.mxu0 0.0
        %874 = vmatprep.subr.mxu0 0.0
        %875 = vmatpush1.msra.mxu0 0.0
        %876 = vmatprep.subr.mxu0 0.0
        %877 = vmatpush1.msra.mxu0 0.0
        %878 = vmatprep.subr.mxu0 0.0
        %879 = vmatpush1.msra.mxu0 0.0
        %880 = vmatprep.subr.mxu0 0.0
        %881 = vmatpush1.msra.mxu0 0.0
        %882 = vmatprep.subr.mxu0 0.0
        %883 = vmatpush1.msra.mxu0 0.0
        %884 = vmatprep.subr.mxu0 0.0
        %885 = vmatpush1.msra.mxu0 0.0
        %886 = vmatprep.subr.mxu0 0.0
        %887 = vmatpush1.msra.mxu0 0.0
        %888 = vmatprep.mubr.f32.mxu0 %v813
        %889 = vmatmul.mubr.f32.gmra.mrb[0].mxu0 %v779
        %v890 = vpop.f32.mrb[0].mxu0
        %v891 = vadd.f32 %v794, %v890
        %v892 = vpop.f32.mrb[0].mxu0
        %v893 = vadd.f32 %v794, %v892
        %894 = vmatprep.mubr.f32.mxu0 %v816
        %895 = vmatmul.mubr.f32.gmra.mrb[0].mxu0 %v781
        %v896 = vpop.f32.mrb[0].mxu0
        %v897 = vadd.f32 %v799, %v896
        %v898 = vpop.f32.mrb[0].mxu0
        %v899 = vadd.f32 %v799, %v898
        %900 = vmatprep.mubr.f32.mxu0 %v819
        %901 = vmatmul.mubr.f32.gmra.mrb[0].mxu0 %v783
        %v902 = vpop.f32.mrb[0].mxu0
        %v903 = vadd.f32 %v804, %v902
        %v904 = vpop.f32.mrb[0].mxu0
        %v905 = vadd.f32 %v804, %v904
        %906 = vmatprep.mubr.f32.mxu0 %v822
        %907 = vmatmul.mubr.f32.gmra.mrb[0].mxu0 %v785
        %v908 = vpop.f32.mrb[0].mxu0
        %v909 = vadd.f32 %v809, %v908
        %v910 = vpop.f32.mrb[0].mxu0
        %v911 = vadd.f32 %v809, %v910
        %912 = vdwg.mxu0
        %v913 = vmax.f32 %v891, 0.0
        %v914 = vmax.f32 %v893, 0.0
        %v915 = vmax.f32 %v897, 0.0
        %v916 = vmax.f32 %v899, 0.0
        %v917 = vmax.f32 %v903, 0.0
        %v918 = vmax.f32 %v905, 0.0
        %v919 = vmax.f32 %v909, 0.0
        %v920 = vmax.f32 %v911, 0.0
        %921 = vrot.lane.b32.xlu0 %v913, 17
        %v922 = vpop.permute.xlu0 %921
        %923 = vrot.lane.b32.xlu0 %v915, 17
        %v924 = vpop.permute.xlu0 %923
        %925 = vrot.lane.b32.xlu0 %v917, 17
        %v926 = vpop.permute.xlu0 %925
        %927 = vrot.lane.b32.xlu0 %v919, 17
        %v928 = vpop.permute.xlu0 %927
        %929 = vrot.lane.b32.xlu0 %v914, 17
        %v930 = vpop.permute.xlu0 %929
        %931 = vrot.lane.b32.xlu0 %v916, 17
        %v932 = vpop.permute.xlu0 %931
        %933 = vrot.lane.b32.xlu0 %v918, 17
        %v934 = vpop.permute.xlu0 %933
        %935 = vrot.lane.b32.xlu0 %v920, 17
        %v936 = vpop.permute.xlu0 %935
        %v937 = vsel %vm417, %v922, %v930
        %v938 = vsel %vm417, %v924, %v932
        %v939 = vsel %vm417, %v926, %v934
        %v940 = vsel %vm417, %v928, %v936
        %v941 = vsel %vm417, %v930, %v922
        %v942 = vsel %vm417, %v932, %v924
        %v943 = vsel %vm417, %v934, %v926
        %v944 = vsel %vm417, %v936, %v928
        %v945 = vmul.f32 %v941, %v423
        %v946 = vmul.f32 %v937, %v427
        %v947 = vmul.f32 %v942, %v423
        %v948 = vmul.f32 %v938, %v427
        %v949 = vmul.f32 %v943, %v423
        %v950 = vmul.f32 %v939, %v427
        %v951 = vmul.f32 %v944, %v423
        %v952 = vmul.f32 %v940, %v427
        %953 = vrot.lane.b32.xlu0 %v913, 16
        %v954 = vpop.permute.xlu0 %953
        %955 = vrot.lane.b32.xlu0 %v915, 16
        %v956 = vpop.permute.xlu0 %955
        %957 = vrot.lane.b32.xlu0 %v917, 16
        %v958 = vpop.permute.xlu0 %957
        %959 = vrot.lane.b32.xlu0 %v919, 16
        %v960 = vpop.permute.xlu0 %959
        %961 = vrot.lane.b32.xlu0 %v914, 16
        %v962 = vpop.permute.xlu0 %961
        %963 = vrot.lane.b32.xlu0 %v916, 16
        %v964 = vpop.permute.xlu0 %963
        %965 = vrot.lane.b32.xlu0 %v918, 16
        %v966 = vpop.permute.xlu0 %965
        %967 = vrot.lane.b32.xlu0 %v920, 16
        %v968 = vpop.permute.xlu0 %967
        %v969 = vsel %vm434, %v954, %v962
        %v970 = vsel %vm434, %v956, %v964
        %v971 = vsel %vm434, %v958, %v966
        %v972 = vsel %vm434, %v960, %v968
        %v973 = vsel %vm434, %v962, %v954
        %v974 = vsel %vm434, %v964, %v956
        %v975 = vsel %vm434, %v966, %v958
        %v976 = vsel %vm434, %v968, %v960
        %v977 = vmul.f32 %v973, %v440
        %v978 = vmul.f32 %v969, %v444
        %v979 = vmul.f32 %v974, %v440
        %v980 = vmul.f32 %v970, %v444
        %v981 = vmul.f32 %v975, %v440
        %v982 = vmul.f32 %v971, %v444
        %v983 = vmul.f32 %v976, %v440
        %v984 = vmul.f32 %v972, %v444
        %985 = vrot.lane.b32.xlu0 %v913, 15
        %v986 = vpop.permute.xlu0 %985
        %987 = vrot.lane.b32.xlu0 %v915, 15
        %v988 = vpop.permute.xlu0 %987
        %989 = vrot.lane.b32.xlu0 %v917, 15
        %v990 = vpop.permute.xlu0 %989
        %991 = vrot.lane.b32.xlu0 %v919, 15
        %v992 = vpop.permute.xlu0 %991
        %993 = vrot.lane.b32.xlu0 %v914, 15
        %v994 = vpop.permute.xlu0 %993
        %995 = vrot.lane.b32.xlu0 %v916, 15
        %v996 = vpop.permute.xlu0 %995
        %997 = vrot.lane.b32.xlu0 %v918, 15
        %v998 = vpop.permute.xlu0 %997
        %999 = vrot.lane.b32.xlu0 %v920, 15
        %v1000 = vpop.permute.xlu0 %999
        %v1001 = vsel %vm451, %v986, %v994
        %v1002 = vsel %vm451, %v988, %v996
        %v1003 = vsel %vm451, %v990, %v998
        %v1004 = vsel %vm451, %v992, %v1000
        %v1005 = vsel %vm451, %v994, %v986
        %v1006 = vsel %vm451, %v996, %v988
        %v1007 = vsel %vm451, %v998, %v990
        %v1008 = vsel %vm451, %v1000, %v992
        %v1009 = vmul.f32 %v1005, %v457
        %v1010 = vmul.f32 %v1001, %v461
        %v1011 = vmul.f32 %v1006, %v457
        %v1012 = vmul.f32 %v1002, %v461
        %v1013 = vmul.f32 %v1007, %v457
        %v1014 = vmul.f32 %v1003, %v461
        %v1015 = vmul.f32 %v1008, %v457
        %v1016 = vmul.f32 %v1004, %v461
        %1017 = vrot.lane.b32.xlu0 %v913, 1
        %v1018 = vpop.permute.xlu0 %1017
        %1019 = vrot.lane.b32.xlu0 %v915, 1
        %v1020 = vpop.permute.xlu0 %1019
        %1021 = vrot.lane.b32.xlu0 %v917, 1
        %v1022 = vpop.permute.xlu0 %1021
        %1023 = vrot.lane.b32.xlu0 %v919, 1
        %v1024 = vpop.permute.xlu0 %1023
        %1025 = vrot.lane.b32.xlu0 %v914, 1
        %v1026 = vpop.permute.xlu0 %1025
        %1027 = vrot.lane.b32.xlu0 %v916, 1
        %v1028 = vpop.permute.xlu0 %1027
        %1029 = vrot.lane.b32.xlu0 %v918, 1
        %v1030 = vpop.permute.xlu0 %1029
        %1031 = vrot.lane.b32.xlu0 %v920, 1
        %v1032 = vpop.permute.xlu0 %1031
        %v1033 = vsel %vm468, %v1018, %v1026
        %v1034 = vsel %vm468, %v1020, %v1028
        %v1035 = vsel %vm468, %v1022, %v1030
        %v1036 = vsel %vm468, %v1024, %v1032
        %v1037 = vsel %vm468, %v1026, %v1018
        %v1038 = vsel %vm468, %v1028, %v1020
        %v1039 = vsel %vm468, %v1030, %v1022
        %v1040 = vsel %vm468, %v1032, %v1024
        %v1041 = vmul.f32 %v1037, %v474
        %v1042 = vmul.f32 %v1033, %v478
        %v1043 = vmul.f32 %v1038, %v474
        %v1044 = vmul.f32 %v1034, %v478
        %v1045 = vmul.f32 %v1039, %v474
        %v1046 = vmul.f32 %v1035, %v478
        %v1047 = vmul.f32 %v1040, %v474
        %v1048 = vmul.f32 %v1036, %v478
        %1049 = vrot.lane.b32.xlu0 %v913, 127
        %v1050 = vpop.permute.xlu0 %1049
        %1051 = vrot.lane.b32.xlu0 %v915, 127
        %v1052 = vpop.permute.xlu0 %1051
        %1053 = vrot.lane.b32.xlu0 %v917, 127
        %v1054 = vpop.permute.xlu0 %1053
        %1055 = vrot.lane.b32.xlu0 %v919, 127
        %v1056 = vpop.permute.xlu0 %1055
        %1057 = vrot.lane.b32.xlu0 %v914, 127
        %v1058 = vpop.permute.xlu0 %1057
        %1059 = vrot.lane.b32.xlu0 %v916, 127
        %v1060 = vpop.permute.xlu0 %1059
        %1061 = vrot.lane.b32.xlu0 %v918, 127
        %v1062 = vpop.permute.xlu0 %1061
        %1063 = vrot.lane.b32.xlu0 %v920, 127
        %v1064 = vpop.permute.xlu0 %1063
        %v1065 = vsel %vm485, %v1050, %v1058
        %v1066 = vsel %vm485, %v1052, %v1060
        %v1067 = vsel %vm485, %v1054, %v1062
        %v1068 = vsel %vm485, %v1056, %v1064
        %v1069 = vsel %vm485, %v1058, %v1050
        %v1070 = vsel %vm485, %v1060, %v1052
        %v1071 = vsel %vm485, %v1062, %v1054
        %v1072 = vsel %vm485, %v1064, %v1056
        %v1073 = vmul.f32 %v1065, %v491
        %v1074 = vmul.f32 %v1069, %v495
        %v1075 = vmul.f32 %v1066, %v491
        %v1076 = vmul.f32 %v1070, %v495
        %v1077 = vmul.f32 %v1067, %v491
        %v1078 = vmul.f32 %v1071, %v495
        %v1079 = vmul.f32 %v1068, %v491
        %v1080 = vmul.f32 %v1072, %v495
        %1081 = vrot.lane.b32.xlu0 %v913, 113
        %v1082 = vpop.permute.xlu0 %1081
        %1083 = vrot.lane.b32.xlu0 %v915, 113
        %v1084 = vpop.permute.xlu0 %1083
        %1085 = vrot.lane.b32.xlu0 %v917, 113
        %v1086 = vpop.permute.xlu0 %1085
        %1087 = vrot.lane.b32.xlu0 %v919, 113
        %v1088 = vpop.permute.xlu0 %1087
        %1089 = vrot.lane.b32.xlu0 %v914, 113
        %v1090 = vpop.permute.xlu0 %1089
        %1091 = vrot.lane.b32.xlu0 %v916, 113
        %v1092 = vpop.permute.xlu0 %1091
        %1093 = vrot.lane.b32.xlu0 %v918, 113
        %v1094 = vpop.permute.xlu0 %1093
        %1095 = vrot.lane.b32.xlu0 %v920, 113
        %v1096 = vpop.permute.xlu0 %1095
        %v1097 = vsel %vm502, %v1082, %v1090
        %v1098 = vsel %vm502, %v1084, %v1092
        %v1099 = vsel %vm502, %v1086, %v1094
        %v1100 = vsel %vm502, %v1088, %v1096
        %v1101 = vsel %vm502, %v1090, %v1082
        %v1102 = vsel %vm502, %v1092, %v1084
        %v1103 = vsel %vm502, %v1094, %v1086
        %v1104 = vsel %vm502, %v1096, %v1088
        %v1105 = vmul.f32 %v1097, %v508
        %v1106 = vmul.f32 %v1101, %v512
        %v1107 = vmul.f32 %v1098, %v508
        %v1108 = vmul.f32 %v1102, %v512
        %v1109 = vmul.f32 %v1099, %v508
        %v1110 = vmul.f32 %v1103, %v512
        %v1111 = vmul.f32 %v1100, %v508
        %v1112 = vmul.f32 %v1104, %v512
        %1113 = vrot.lane.b32.xlu0 %v913, 112
        %v1114 = vpop.permute.xlu0 %1113
        %1115 = vrot.lane.b32.xlu0 %v915, 112
        %v1116 = vpop.permute.xlu0 %1115
        %1117 = vrot.lane.b32.xlu0 %v917, 112
        %v1118 = vpop.permute.xlu0 %1117
        %1119 = vrot.lane.b32.xlu0 %v919, 112
        %v1120 = vpop.permute.xlu0 %1119
        %1121 = vrot.lane.b32.xlu0 %v914, 112
        %v1122 = vpop.permute.xlu0 %1121
        %1123 = vrot.lane.b32.xlu0 %v916, 112
        %v1124 = vpop.permute.xlu0 %1123
        %1125 = vrot.lane.b32.xlu0 %v918, 112
        %v1126 = vpop.permute.xlu0 %1125
        %1127 = vrot.lane.b32.xlu0 %v920, 112
        %v1128 = vpop.permute.xlu0 %1127
        %v1129 = vsel %vm519, %v1114, %v1122
        %v1130 = vsel %vm519, %v1116, %v1124
        %v1131 = vsel %vm519, %v1118, %v1126
        %v1132 = vsel %vm519, %v1120, %v1128
        %v1133 = vsel %vm519, %v1122, %v1114
        %v1134 = vsel %vm519, %v1124, %v1116
        %v1135 = vsel %vm519, %v1126, %v1118
        %v1136 = vsel %vm519, %v1128, %v1120
        %v1137 = vmul.f32 %v1129, %v525
        %v1138 = vmul.f32 %v1133, %v529
        %v1139 = vmul.f32 %v1130, %v525
        %v1140 = vmul.f32 %v1134, %v529
        %v1141 = vmul.f32 %v1131, %v525
        %v1142 = vmul.f32 %v1135, %v529
        %v1143 = vmul.f32 %v1132, %v525
        %v1144 = vmul.f32 %v1136, %v529
        %1145 = vrot.lane.b32.xlu0 %v913, 111
        %v1146 = vpop.permute.xlu0 %1145
        %1147 = vrot.lane.b32.xlu0 %v915, 111
        %v1148 = vpop.permute.xlu0 %1147
        %1149 = vrot.lane.b32.xlu0 %v917, 111
        %v1150 = vpop.permute.xlu0 %1149
        %1151 = vrot.lane.b32.xlu0 %v919, 111
        %v1152 = vpop.permute.xlu0 %1151
        %1153 = vrot.lane.b32.xlu0 %v914, 111
        %v1154 = vpop.permute.xlu0 %1153
        %1155 = vrot.lane.b32.xlu0 %v916, 111
        %v1156 = vpop.permute.xlu0 %1155
        %1157 = vrot.lane.b32.xlu0 %v918, 111
        %v1158 = vpop.permute.xlu0 %1157
        %1159 = vrot.lane.b32.xlu0 %v920, 111
        %v1160 = vpop.permute.xlu0 %1159
        %v1161 = vsel %vm536, %v1146, %v1154
        %v1162 = vsel %vm536, %v1148, %v1156
        %v1163 = vsel %vm536, %v1150, %v1158
        %v1164 = vsel %vm536, %v1152, %v1160
        %v1165 = vsel %vm536, %v1154, %v1146
        %v1166 = vsel %vm536, %v1156, %v1148
        %v1167 = vsel %vm536, %v1158, %v1150
        %v1168 = vsel %vm536, %v1160, %v1152
        %v1169 = vmul.f32 %v1161, %v542
        %v1170 = vmul.f32 %v1165, %v546
        %v1171 = vmul.f32 %v1162, %v542
        %v1172 = vmul.f32 %v1166, %v546
        %v1173 = vmul.f32 %v1163, %v542
        %v1174 = vmul.f32 %v1167, %v546
        %v1175 = vmul.f32 %v1164, %v542
        %v1176 = vmul.f32 %v1168, %v546
        %v1177 = vld [vmem:[#allocation7] sm:$0xff]
        %v1178 = vld [vmem:[#allocation7 + $0x8] sm:$0xff]
        %v1179 = vld [vmem:[#allocation7 + $0x10] sm:$0xff]
        %v1180 = vld [vmem:[#allocation7 + $0x18] sm:$0xff]
        %v1181 = vld [vmem:[#allocation7 + $0x20] sm:$0xff]
        %v1182 = vld [vmem:[#allocation7 + $0x28] sm:$0xff]
        %v1183 = vld [vmem:[%s7] sm:$0xff]
        %v1184 = vld [vmem:[%s7 + $0x8] sm:$0xff]
        %1186 = vset.pattern.permute.xlu0 0
        %1187 = vperm.xlu0 %1186, %v1183
        %v1188 = vpop.permute.xlu0 %1187
        %1191 = vset.pattern.permute.xlu0 0
        %1192 = vperm.xlu0 %1191, %v1184
        %v1193 = vpop.permute.xlu0 %1192
        %vm1195 = vcmask 261120
        %v1197 = vsel %vm1195, %v1179, 0
        %v1200 = vsel %vm1195, %v1182, 0
        %1202 = vmatprep.subr.mxu0 %v946
        %1203 = vmatpush1.msra.mxu0 %v945
        %1204 = vmatprep.subr.mxu0 %v948
        %1205 = vmatpush1.msra.mxu0 %v947
        %1206 = vmatprep.subr.mxu0 %v950
        %1207 = vmatpush1.msra.mxu0 %v949
        %1208 = vmatprep.subr.mxu0 %v952
        %1209 = vmatpush1.msra.mxu0 %v951
        %1210 = vmatprep.subr.mxu0 %v978
        %1211 = vmatpush1.msra.mxu0 %v977
        %1212 = vmatprep.subr.mxu0 %v980
        %1213 = vmatpush1.msra.mxu0 %v979
        %1214 = vmatprep.subr.mxu0 %v982
        %1215 = vmatpush1.msra.mxu0 %v981
        %1216 = vmatprep.subr.mxu0 %v984
        %1217 = vmatpush1.msra.mxu0 %v983
        %1218 = vmatprep.subr.mxu0 %v1010
        %1219 = vmatpush1.msra.mxu0 %v1009
        %1220 = vmatprep.subr.mxu0 %v1012
        %1221 = vmatpush1.msra.mxu0 %v1011
        %1222 = vmatprep.subr.mxu0 %v1014
        %1223 = vmatpush1.msra.mxu0 %v1013
        %1224 = vmatprep.subr.mxu0 %v1016
        %1225 = vmatpush1.msra.mxu0 %v1015
        %1226 = vmatprep.subr.mxu0 %v1042
        %1227 = vmatpush1.msra.mxu0 %v1041
        %1228 = vmatprep.subr.mxu0 %v1044
        %1229 = vmatpush1.msra.mxu0 %v1043
        %1230 = vmatprep.subr.mxu0 %v1046
        %1231 = vmatpush1.msra.mxu0 %v1045
        %1232 = vmatprep.subr.mxu0 %v1048
        %1233 = vmatpush1.msra.mxu0 %v1047
        %1234 = vmatprep.subr.mxu0 %v914
        %1235 = vmatpush1.msra.mxu0 %v913
        %1236 = vmatprep.subr.mxu0 %v916
        %1237 = vmatpush1.msra.mxu0 %v915
        %1238 = vmatprep.subr.mxu0 %v918
        %1239 = vmatpush1.msra.mxu0 %v917
        %1240 = vmatprep.subr.mxu0 %v920
        %1241 = vmatpush1.msra.mxu0 %v919
        %1242 = vmatprep.subr.mxu0 %v1074
        %1243 = vmatpush1.msra.mxu0 %v1073
        %1244 = vmatprep.subr.mxu0 %v1076
        %1245 = vmatpush1.msra.mxu0 %v1075
        %1246 = vmatprep.subr.mxu0 %v1078
        %1247 = vmatpush1.msra.mxu0 %v1077
        %1248 = vmatprep.subr.mxu0 %v1080
        %1249 = vmatpush1.msra.mxu0 %v1079
        %1250 = vmatprep.subr.mxu0 %v1106
        %1251 = vmatpush1.msra.mxu0 %v1105
        %1252 = vmatprep.subr.mxu0 %v1108
        %1253 = vmatpush1.msra.mxu0 %v1107
        %1254 = vmatprep.subr.mxu0 %v1110
        %1255 = vmatpush1.msra.mxu0 %v1109
        %1256 = vmatprep.subr.mxu0 %v1112
        %1257 = vmatpush1.msra.mxu0 %v1111
        %1258 = vmatprep.subr.mxu0 %v1138
        %1259 = vmatpush1.msra.mxu0 %v1137
        %1260 = vmatprep.subr.mxu0 %v1140
        %1261 = vmatpush1.msra.mxu0 %v1139
        %1262 = vmatprep.subr.mxu0 %v1142
        %1263 = vmatpush1.msra.mxu0 %v1141
        %1264 = vmatprep.subr.mxu0 %v1144
        %1265 = vmatpush1.msra.mxu0 %v1143
        %1266 = vmatprep.mubr.f32.mxu0 %v1178
        %1267 = vmatmul.mubr.f32.gmra.mrb[0].mxu0 %v1177
        %v1268 = vpop.f32.mrb[0].mxu0
        %v1269 = vadd.f32 %v1188, %v1268
        %v1270 = vpop.f32.mrb[0].mxu0
        %v1271 = vadd.f32 %v1188, %v1270
        %1272 = vmatprep.mubr.f32.mxu0 %v1181
        %1273 = vmatmul.mubr.f32.gmra.mrb[0].mxu0 %v1180
        %v1274 = vpop.f32.mrb[0].mxu0
        %v1275 = vadd.f32 %v1193, %v1274
        %v1276 = vpop.f32.mrb[0].mxu0
        %v1277 = vadd.f32 %v1193, %v1276
        %1278 = vdwg.mxu0
        %1279 = vmatprep.subr.mxu0 %v1170
        %1280 = vmatpush1.msra.mxu0 %v1169
        %1281 = vmatprep.subr.mxu0 %v1172
        %1282 = vmatpush1.msra.mxu0 %v1171
        %1283 = vmatprep.subr.mxu0 %v1174
        %1284 = vmatpush1.msra.mxu0 %v1173
        %1285 = vmatprep.subr.mxu0 %v1176
        %1286 = vmatpush1.msra.mxu0 %v1175
        %1287 = vmatprep.subr.mxu0 0.0
        %1288 = vmatpush1.msra.mxu0 0.0
        %1289 = vmatprep.subr.mxu0 0.0
        %1290 = vmatpush1.msra.mxu0 0.0
        %1291 = vmatprep.subr.mxu0 0.0
        %1292 = vmatpush1.msra.mxu0 0.0
        %1293 = vmatprep.subr.mxu0 0.0
        %1294 = vmatpush1.msra.mxu0 0.0
        %1295 = vmatprep.subr.mxu0 0.0
        %1296 = vmatpush1.msra.mxu0 0.0
        %1297 = vmatprep.subr.mxu0 0.0
        %1298 = vmatpush1.msra.mxu0 0.0
        %1299 = vmatprep.subr.mxu0 0.0
        %1300 = vmatpush1.msra.mxu0 0.0
        %1301 = vmatprep.subr.mxu0 0.0
        %1302 = vmatpush1.msra.mxu0 0.0
        %1303 = vmatprep.subr.mxu0 0.0
        %1304 = vmatpush1.msra.mxu0 0.0
        %1305 = vmatprep.subr.mxu0 0.0
        %1306 = vmatpush1.msra.mxu0 0.0
        %1307 = vmatprep.subr.mxu0 0.0
        %1308 = vmatpush1.msra.mxu0 0.0
        %1309 = vmatprep.subr.mxu0 0.0
        %1310 = vmatpush1.msra.mxu0 0.0
        %1311 = vmatprep.subr.mxu0 0.0
        %1312 = vmatpush1.msra.mxu0 0.0
        %1313 = vmatprep.subr.mxu0 0.0
        %1314 = vmatpush1.msra.mxu0 0.0
        %1315 = vmatprep.subr.mxu0 0.0
        %1316 = vmatpush1.msra.mxu0 0.0
        %1317 = vmatprep.subr.mxu0 0.0
        %1318 = vmatpush1.msra.mxu0 0.0
        %1319 = vmatprep.subr.mxu0 0.0
        %1320 = vmatpush1.msra.mxu0 0.0
        %1321 = vmatprep.subr.mxu0 0.0
        %1322 = vmatpush1.msra.mxu0 0.0
        %1323 = vmatprep.subr.mxu0 0.0
        %1324 = vmatpush1.msra.mxu0 0.0
        %1325 = vmatprep.subr.mxu0 0.0
        %1326 = vmatpush1.msra.mxu0 0.0
        %1327 = vmatprep.subr.mxu0 0.0
        %1328 = vmatpush1.msra.mxu0 0.0
        %1329 = vmatprep.subr.mxu0 0.0
        %1330 = vmatpush1.msra.mxu0 0.0
        %1331 = vmatprep.subr.mxu0 0.0
        %1332 = vmatpush1.msra.mxu0 0.0
        %1333 = vmatprep.subr.mxu0 0.0
        %1334 = vmatpush1.msra.mxu0 0.0
        %1335 = vmatprep.subr.mxu0 0.0
        %1336 = vmatpush1.msra.mxu0 0.0
        %1337 = vmatprep.subr.mxu0 0.0
        %1338 = vmatpush1.msra.mxu0 0.0
        %1339 = vmatprep.subr.mxu0 0.0
        %1340 = vmatpush1.msra.mxu0 0.0
        %1341 = vmatprep.subr.mxu0 0.0
        %1342 = vmatpush1.msra.mxu0 0.0
        %1343 = vmatprep.mubr.f32.mxu0 0.0
        %1344 = vmatmul.mubr.f32.gmra.mrb[0].mxu0 %v1197
        %v1345 = vpop.f32.mrb[0].mxu0
        %v1346 = vadd.f32 %v1269, %v1345
        %v1347 = vpop.f32.mrb[0].mxu0
        %v1348 = vadd.f32 %v1271, %v1347
        %1349 = vmatprep.mubr.f32.mxu0 0.0
        %1350 = vmatmul.mubr.f32.gmra.mrb[0].mxu0 %v1200
        %v1351 = vpop.f32.mrb[0].mxu0
        %v1352 = vadd.f32 %v1275, %v1351
        %v1353 = vpop.f32.mrb[0].mxu0
        %v1354 = vadd.f32 %v1277, %v1353
        %1355 = vdwg.mxu0
        %v1356 = vmax.f32 %v1346, 0.0
        %v1357 = vmax.f32 %v1348, 0.0
        %v1358 = vmax.f32 %v1352, 0.0
        %v1359 = vmax.f32 %v1354, 0.0
        %v1360 = vld [vmem:[%s8] sm:$0x3]
        %v1361 = vld [vmem:[%s9] sm:$0x3]
        %1363 = vset.pattern.permute.xlu0 0
        %1364 = vperm.xlu0 %1363, %v1361
        %v1365 = vpop.permute.xlu0 %1364
        %v1368 = vsel %vm811, %v1360, 0
        %1370 = vmatprep.subr.mxu0 %v1357
        %1371 = vmatpush1.msra.mxu0 %v1356
        %1372 = vmatprep.subr.mxu0 %v1359
        %1373 = vmatpush1.msra.mxu0 %v1358
        %1374 = vmatprep.subr.mxu0 0.0
        %1375 = vmatpush1.msra.mxu0 0.0
        %1376 = vmatprep.subr.mxu0 0.0
        %1377 = vmatpush1.msra.mxu0 0.0
        %1378 = vmatprep.subr.mxu0 0.0
        %1379 = vmatpush1.msra.mxu0 0.0
        %1380 = vmatprep.subr.mxu0 0.0
        %1381 = vmatpush1.msra.mxu0 0.0
        %1382 = vmatprep.subr.mxu0 0.0
        %1383 = vmatpush1.msra.mxu0 0.0
        %1384 = vmatprep.subr.mxu0 0.0
        %1385 = vmatpush1.msra.mxu0 0.0
        %1386 = vmatprep.subr.mxu0 0.0
        %1387 = vmatpush1.msra.mxu0 0.0
        %1388 = vmatprep.subr.mxu0 0.0
        %1389 = vmatpush1.msra.mxu0 0.0
        %1390 = vmatprep.subr.mxu0 0.0
        %1391 = vmatpush1.msra.mxu0 0.0
        %1392 = vmatprep.subr.mxu0 0.0
        %1393 = vmatpush1.msra.mxu0 0.0
        %1394 = vmatprep.subr.mxu0 0.0
        %1395 = vmatpush1.msra.mxu0 0.0
        %1396 = vmatprep.subr.mxu0 0.0
        %1397 = vmatpush1.msra.mxu0 0.0
        %1398 = vmatprep.subr.mxu0 0.0
        %1399 = vmatpush1.msra.mxu0 0.0
        %1400 = vmatprep.subr.mxu0 0.0
        %1401 = vmatpush1.msra.mxu0 0.0
        %1402 = vmatprep.subr.mxu0 0.0
        %1403 = vmatpush1.msra.mxu0 0.0
        %1404 = vmatprep.subr.mxu0 0.0
        %1405 = vmatpush1.msra.mxu0 0.0
        %1406 = vmatprep.subr.mxu0 0.0
        %1407 = vmatpush1.msra.mxu0 0.0
        %1408 = vmatprep.subr.mxu0 0.0
        %1409 = vmatpush1.msra.mxu0 0.0
        %1410 = vmatprep.subr.mxu0 0.0
        %1411 = vmatpush1.msra.mxu0 0.0
        %1412 = vmatprep.subr.mxu0 0.0
        %1413 = vmatpush1.msra.mxu0 0.0
        %1414 = vmatprep.subr.mxu0 0.0
        %1415 = vmatpush1.msra.mxu0 0.0
        %1416 = vmatprep.subr.mxu0 0.0
        %1417 = vmatpush1.msra.mxu0 0.0
        %1418 = vmatprep.subr.mxu0 0.0
        %1419 = vmatpush1.msra.mxu0 0.0
        %1420 = vmatprep.subr.mxu0 0.0
        %1421 = vmatpush1.msra.mxu0 0.0
        %1422 = vmatprep.subr.mxu0 0.0
        %1423 = vmatpush1.msra.mxu0 0.0
        %1424 = vmatprep.subr.mxu0 0.0
        %1425 = vmatpush1.msra.mxu0 0.0
        %1426 = vmatprep.subr.mxu0 0.0
        %1427 = vmatpush1.msra.mxu0 0.0
        %1428 = vmatprep.subr.mxu0 0.0
        %1429 = vmatpush1.msra.mxu0 0.0
        %1430 = vmatprep.subr.mxu0 0.0
        %1431 = vmatpush1.msra.mxu0 0.0
        %1432 = vmatprep.subr.mxu0 0.0
        %1433 = vmatpush1.msra.mxu0 0.0
        %1434 = vmatprep.mubr.f32.mxu0 0.0
        %1435 = vmatmul.mubr.f32.gmra.mrb[0].mxu0 %v1368
        %v1436 = vpop.f32.mrb[0].mxu0
        %v1437 = vadd.f32 %v1365, %v1436
        %v1438 = vpop.f32.mrb[0].mxu0
        %v1439 = vadd.f32 %v1365, %v1438
        %1440 = vdwg.mxu0
        %v1443 = vcombine.low %v1437, %v1439
        %v1445 = vunpack.c.l.s4 1983009808
        %v1446 = vunpack.c.0.s8 %v1445
        %v1447 = vlaneseq
        %v1448 = vshrl.u32 %v1447, 7
        %v1449 = vsub.s32 %v1446, %v1448
        %v1450 = vrot.slane %v1443, %v1449
        %1452 = vst [vmem:[%s404] sm:$0xf] %v1450
        %s1453 = sand.u32 %s251, 1
        %s1454 = scalar_lea.sflag [#allocation4], %s1453
        %s1455 = sand.u32 %s251, 1
        %s1456 = smul.addr %s1455, 4
        %s1457 = scalar_lea.vmem [#allocation8], %s1456
        // Predicated region
        $region73: #{tpu_custom_call.1} parent=59 // pred_check
          %p1458 = pneg %p261
        $region74: #{tpu_custom_call.1} parent=59 // pred_check_branch
          %1460 = sbr.rel (%p1458) target = $region76
        $region75: #{tpu_custom_call.1} parent=59 // pred_region
          %s1462 = ssub.s32 64, 64
          %1463 = vsyncadd %s1454, %s1462
          %s1464 = smul.addr %s28, 2
          %s1465 = smul.addr %s1464, 32
          %s1466 = scalar_lea.hbm %s10, %s1465
          %s1468 = sshll.u32 %s1457, 4
          %s1469 = int_to_ptr.vmem [resolvable:$true] %s1468
          %1471 = dma.vmem_to_hbm [thread:$0]  %s1469, 64, %s1466, %s1454
        $region76: #{tpu_custom_call.1} parent=59 // pred_fallthru
          _
      $region60: #{tpu_custom_call.1} parent=5 // pred_fallthru
        _
      %p1472 = scmp.le.s32.totalorder 2, %s23
      // Predicated region
      $region77: #{tpu_custom_call.1} parent=5 // pred_check
        %p1473 = pneg %p1472
      $region78: #{tpu_custom_call.1} parent=5 // pred_check_branch
        %1475 = sbr.rel (%p1473) target = $region80
      $region79: #{tpu_custom_call.1} parent=5 // pred_region
        %s1476 = ssub.s32 %s23, 2
        // Predicated region
        $region81: #{tpu_custom_call.1} parent=79 // pred_check
          %p1477 = pneg %p267
        $region82: #{tpu_custom_call.1} parent=79 // pred_check_branch
          %1479 = sbr.rel (%p1477) target = $region84
        $region83: #{tpu_custom_call.1} parent=79 // pred_region
          %s1480 = sand.u32 %s252, 1
          %s1481 = scalar_lea.sflag [#allocation4], %s1480
          %s1482 = sand.u32 %s252, 1
          %s1483 = smul.addr %s1482, 4
          %s1484 = scalar_lea.vmem [#allocation8], %s1483
          %1485 = dma.done %s1481, 64
        $region84: #{tpu_custom_call.1} parent=79 // pred_fallthru
          _
      $region80: #{tpu_custom_call.1} parent=5 // pred_fallthru
        _
    $region6: #{tpu_custom_call.1} parent=1 // loop_footer
      %s27 = sadd.s32 1, %s23
    $region7: #{tpu_custom_call.1} parent=1 // loop_footer_branch
      %22 = sbr.rel target = $region3
    $region8: #{tpu_custom_call.1} parent=1 // loop_exit
      _
    %1486 = vsyncpa [#allocation3], 1
    %s1487 = scalar_lea.sflag [#allocation3], 1
    %1488 = vsyncpa %s1487, 1
    %1489 = vsyncpa [#allocation6], 1
    %1490 = vsyncpa [#allocation4], 1
    %s1491 = scalar_lea.sflag [#allocation4], 1
    %1492 = vsyncpa %s1491, 1

</llo_original>
